<compile_context>
chip_gen: v7x
topology: tpu7x:2x2x1
jax: 0.10.0
libtpu: 0.0.40
codegen_flags: <defaults>
</compile_context>

<pallas_src>
import math
import jax
import jax.numpy as jnp
from jax import lax
from jax.experimental import pallas as pl
from jax.experimental.pallas import tpu as pltpu

# ---- model dims (small, consistent with the module: 2 heads, 2 layers) ----
S = 8                 # number of sentences (sequence length)
H = 32                # hidden size
NH = 2                # num_sent_attn_heads
DH = H // NH          # head dim
I = 64                # intermediate (FFN) size
NUM_LAYERS = 2        # num_contextual_layers
MAX_POS = 100 + 20    # max_num_sentences + 20
LN_EPS = 1e-12        # BERT default layer_norm_eps

# ---- packed-slab layout constants ----
WO_OFF = 3 * H        # columns [WO_OFF, WO_OFF+H)  of slab A hold Wo
W1_OFF = 4 * H        # columns [W1_OFF, W1_OFF+I)  of slab A hold W1 (starts at lane 128)
WA_COLS = 3 * H + H + I

# rows of the per-layer vector slab (L, 8, 3H)
ROW_BQKV, ROW_B1, ROW_BO, ROW_B2, ROW_AG, ROW_AB, ROW_FG, ROW_FB = range(8)


# -------------------------- in-kernel math helpers --------------------------

def _layernorm(x, gamma, beta):
    # single-pass variance: one pair of independent reductions instead of a
    # serially-dependent two-pass mean / mean((x-mean)^2).
    mean = jnp.mean(x, axis=-1, keepdims=True)
    mean_sq = jnp.mean(x * x, axis=-1, keepdims=True)
    var = jnp.maximum(mean_sq - mean * mean, 0.0)
    return (x - mean) * lax.rsqrt(var + LN_EPS) * gamma + beta


def _gelu_tanh(x):
    # tanh-approx GELU: transcendental goes to the EUP slot instead of a long
    # dependent VPU multiply chain.  ~1e-3 max deviation vs exact erf GELU.
    c = math.sqrt(2.0 / math.pi)
    return 0.5 * x * (1.0 + jnp.tanh(c * (x + 0.044715 * x * x * x)))


# ------------------------------ fused Pallas kernel ------------------------------

def fused_kernel(x_ref, embed_ref, w_a_ref, w2_ref, vec_ref, o_ref):
    # ---- BertEmbeddings (inputs_embeds path): x + pos + token_type[0], LayerNorm ----
    x = x_ref[...] + embed_ref[0:S, :]
    x = _layernorm(x, embed_ref[S:S + 1, :], embed_ref[S + 1:S + 2, :])

    scale = 1.0 / math.sqrt(DH)

    # ---- statically unrolled encoder layers; x stays resident in vregs/VMEM ----
    for l in range(NUM_LAYERS):
        xb = x.astype(jnp.bfloat16)

        # --- multi-head self-attention (per-head, all slices taken on refs) ---
        attn = jnp.zeros((S, H), jnp.float32)
        for h in range(NH):                             # static unroll over heads
            lo, hi = h * DH, (h + 1) * DH
            qh = (jnp.dot(xb, w_a_ref[l, :, lo:hi],
                          preferred_element_type=jnp.float32)
                  + vec_ref[l, ROW_BQKV:ROW_BQKV + 1, lo:hi])
            kh = (jnp.dot(xb, w_a_ref[l, :, H + lo:H + hi],
                          preferred_element_type=jnp.float32)
                  + vec_ref[l, ROW_BQKV:ROW_BQKV + 1, H + lo:H + hi])
            vh = (jnp.dot(xb, w_a_ref[l, :, 2 * H + lo:2 * H + hi],
                          preferred_element_type=jnp.float32)
                  + vec_ref[l, ROW_BQKV:ROW_BQKV + 1, 2 * H + lo:2 * H + hi])

            # q @ k^T without materializing a transpose: contract last dims.
            s = lax.dot_general(qh.astype(jnp.bfloat16), kh.astype(jnp.bfloat16),
                                dimension_numbers=(((1,), (1,)), ((), ())),
                                preferred_element_type=jnp.float32) * scale
            s = s - jnp.max(s, axis=-1, keepdims=True)
            p = jnp.exp(s)
            p = p * pl.reciprocal(jnp.sum(p, axis=-1, keepdims=True), approx=True)
            ctx = jnp.dot(p.astype(jnp.bfloat16), vh.astype(jnp.bfloat16),
                          preferred_element_type=jnp.float32)
            # output projection accumulated per head (no lane-axis concatenate);
            # the per-head Wo rows are a ref slice of slab A.
            attn = attn + jnp.dot(ctx.astype(jnp.bfloat16),
                                  w_a_ref[l, lo:hi, WO_OFF:WO_OFF + H],
                                  preferred_element_type=jnp.float32)

        attn = attn + vec_ref[l, ROW_BO:ROW_BO + 1, 0:H]
        x = _layernorm(attn + x,
                       vec_ref[l, ROW_AG:ROW_AG + 1, 0:H],
                       vec_ref[l, ROW_AB:ROW_AB + 1, 0:H])

        # --- feed-forward: BertIntermediate (GELU) + BertOutput (residual + LN) ---
        hdn = (jnp.dot(x.astype(jnp.bfloat16), w_a_ref[l, :, W1_OFF:W1_OFF + I],
                       preferred_element_type=jnp.float32)
               + vec_ref[l, ROW_B1:ROW_B1 + 1, 0:I])
        hdn = _gelu_tanh(hdn)
        y = (jnp.dot(hdn.astype(jnp.bfloat16), w2_ref[l],
                     preferred_element_type=jnp.float32)
             + vec_ref[l, ROW_B2:ROW_B2 + 1, 0:H])
        x = _layernorm(y + x,
                       vec_ref[l, ROW_FG:ROW_FG + 1, 0:H],
                       vec_ref[l, ROW_FB:ROW_FB + 1, 0:H])

    o_ref[...] = x


# ------------------------------ pallas_call glue ------------------------------

_N_INPUTS = 5  # x, embed slab, weight slab A, W2 slab, vector slab


def transformer_context_forward(cls_embeddings, params):
    # unsqueeze(0)/squeeze() of the batch-of-1 dim is a pure reshape; elided.
    vmem = pl.BlockSpec(memory_space=pltpu.MemorySpace.VMEM)
    return pl.pallas_call(
        fused_kernel,
        out_shape=jax.ShapeDtypeStruct((S, H), jnp.float32),
        in_specs=[vmem] * _N_INPUTS,
        out_specs=vmem,
    )(cls_embeddings, params["embed"], params["w_a"], params["w2"], params["vec"])


# ------------------------------ parameters ------------------------------

def init_params(key):
    """BERT-style init (weights ~ N(0, 0.02)), packed into the kernel's slab layout.

    Small random biases / LN affines are used (instead of exact zeros/ones) so the
    reference comparison actually exercises every packed row.
    """
    keys = iter(jax.random.split(key, 32))

    def nrm(shape, scale=0.02):
        return scale * jax.random.normal(next(keys), shape, jnp.float32)

    # ---- embedding slab: rows [0:S] = pos + token_type (presummed), row S/S+1 = LN gamma/beta
    pos = nrm((MAX_POS, H))[:S]
    tok = nrm((2, H))[0:1]
    emb_g = 1.0 + nrm((1, H))
    emb_b = nrm((1, H))
    embed = jnp.concatenate([pos + tok, emb_g, emb_b], axis=0)            # (S+2, H)

    w_a, w2s, vecs = [], [], []
    for _ in range(NUM_LAYERS):
        wqkv = nrm((H, 3 * H))                                            # fused [Wq | Wk | Wv]
        wo = nrm((H, H))
        w1 = nrm((H, I))
        w2 = nrm((I, H))
        w_a.append(jnp.concatenate([wqkv, wo, w1], axis=1))               # (H, 3H+H+I)
        w2s.append(w2)

        vec = jnp.zeros((8, 3 * H), jnp.float32)
        vec = vec.at[ROW_BQKV, :3 * H].set(nrm((3 * H,)))
        vec = vec.at[ROW_B1, :I].set(nrm((I,)))
        vec = vec.at[ROW_BO, :H].set(nrm((H,)))
        vec = vec.at[ROW_B2, :H].set(nrm((H,)))
        vec = vec.at[ROW_AG, :H].set(1.0 + nrm((H,)))
        vec = vec.at[ROW_AB, :H].set(nrm((H,)))
        vec = vec.at[ROW_FG, :H].set(1.0 + nrm((H,)))
        vec = vec.at[ROW_FB, :H].set(nrm((H,)))
        vecs.append(vec)

    return {
        "embed": embed,                                                   # (S+2, H)   f32
        "w_a": jnp.stack(w_a).astype(jnp.bfloat16),                       # (L, H, 192) bf16
        "w2": jnp.stack(w2s).astype(jnp.bfloat16),                        # (L, I, H)   bf16
        "vec": jnp.stack(vecs),                                           # (L, 8, 96)  f32
    }


# ------------------------------ pure-JAX reference ------------------------------

def reference_forward(cls_embeddings, params):
    """Faithful f32 reference (exact erf-GELU, exact softmax division)."""
    embed = params["embed"]
    w_a = params["w_a"].astype(jnp.float32)
    w2 = params["w2"].astype(jnp.float32)
    vec = params["vec"]

    def ln(x, g, b):
        m = jnp.mean(x, -1, keepdims=True)
        v = jnp.mean((x - m) ** 2, -1, keepdims=True)
        return (x - m) / jnp.sqrt(v + LN_EPS) * g + b

    x = cls_embeddings + embed[0:S]
    x = ln(x, embed[S:S + 1], embed[S + 1:S + 2])
    for l in range(NUM_LAYERS):
        wqkv = w_a[l, :, :3 * H]
        wo = w_a[l, :, WO_OFF:WO_OFF + H]
        w1 = w_a[l, :, W1_OFF:W1_OFF + I]
        qkv = x @ wqkv + vec[l, ROW_BQKV, :3 * H]
        q, k, v = qkv[:, :H], qkv[:, H:2 * H], qkv[:, 2 * H:]
        attn = jnp.zeros((S, H), jnp.float32)
        for h in range(NH):
            lo, hi = h * DH, (h + 1) * DH
            s = (q[:, lo:hi] @ k[:, lo:hi].T) / math.sqrt(DH)
            p = jax.nn.softmax(s, axis=-1)
            attn = attn + (p @ v[:, lo:hi]) @ wo[lo:hi, :]
        attn = attn + vec[l, ROW_BO, :H]
        x = ln(attn + x, vec[l, ROW_AG, :H], vec[l, ROW_AB, :H])
        hdn = jax.nn.gelu(x @ w1 + vec[l, ROW_B1, :I], approximate=False)
        y = hdn @ w2[l] + vec[l, ROW_B2, :H]
        x = ln(y + x, vec[l, ROW_FG, :H], vec[l, ROW_FB, :H])
    return x


# ------------------------------ main ------------------------------

if __name__ == "__main__":
    key = jax.random.PRNGKey(0)
    k_in, k_params = jax.random.split(key)
    cls_embeddings = jax.random.normal(k_in, (S, H), jnp.float32)

    params = init_params(k_params)
    out = transformer_context_forward(cls_embeddings, params)
    out = jax.block_until_ready(out)

    assert out.shape == (S, H), out.shape
    assert bool(jnp.all(jnp.isfinite(out)))

    ref = reference_forward(cls_embeddings, params)
    max_err = float(jnp.max(jnp.abs(out - ref)))
    assert max_err < 5e-2, f"max abs error vs reference: {max_err}"

    print("KERNEL_OK")
</pallas_src>

<mosaic_0001>
module attributes {stable_mosaic.version = 11 : i64} {
  func.func @fused_kernel(%arg0: memref<8x32xf32, #tpu.memory_space<vmem>>, %arg1: memref<10x32xf32, #tpu.memory_space<vmem>>, %arg2: memref<2x32x192xbf16, #tpu.memory_space<vmem>>, %arg3: memref<2x64x32xbf16, #tpu.memory_space<vmem>>, %arg4: memref<2x8x96xf32, #tpu.memory_space<vmem>>, %arg5: memref<8x32xf32, #tpu.memory_space<vmem>>) attributes {dimension_semantics = [], scalar_prefetch = 0 : i64, scratch_operands = 0 : i64, tpu.core_type = #tpu.core_type<tc>} {
    %c0 = arith.constant 0 : index
    %c0_0 = arith.constant 0 : index
    %0 = vector.load %arg0[%c0, %c0_0] : memref<8x32xf32, #tpu.memory_space<vmem>>, vector<8x32xf32>
    %c0_1 = arith.constant 0 : index
    %c0_2 = arith.constant 0 : index
    %1 = vector.load %arg1[%c0_1, %c0_2] : memref<10x32xf32, #tpu.memory_space<vmem>>, vector<8x32xf32>
    %2 = arith.addf %0, %1 : vector<8x32xf32>
    %c8 = arith.constant 8 : index
    %c0_3 = arith.constant 0 : index
    %3 = vector.load %arg1[%c8, %c0_3] : memref<10x32xf32, #tpu.memory_space<vmem>>, vector<1x32xf32>
    %c9 = arith.constant 9 : index
    %c0_4 = arith.constant 0 : index
    %4 = vector.load %arg1[%c9, %c0_4] : memref<10x32xf32, #tpu.memory_space<vmem>>, vector<1x32xf32>
    %cst = arith.constant dense<0.000000e+00> : vector<8xf32>
    %5 = vector.multi_reduction <add>, %2, %cst [1] : vector<8x32xf32> to vector<8xf32>
    %6 = vector.shape_cast %5 : vector<8xf32> to vector<8x1xf32>
    %cst_5 = arith.constant 3.200000e+01 : f32
    %7 = vector.broadcast %cst_5 : f32 to vector<8x1xf32>
    %8 = arith.divf %6, %7 : vector<8x1xf32>
    %9 = arith.mulf %2, %2 : vector<8x32xf32>
    %cst_6 = arith.constant dense<0.000000e+00> : vector<8xf32>
    %10 = vector.multi_reduction <add>, %9, %cst_6 [1] : vector<8x32xf32> to vector<8xf32>
    %11 = vector.shape_cast %10 : vector<8xf32> to vector<8x1xf32>
    %cst_7 = arith.constant 3.200000e+01 : f32
    %12 = vector.broadcast %cst_7 : f32 to vector<8x1xf32>
    %13 = arith.divf %11, %12 : vector<8x1xf32>
    %14 = arith.mulf %8, %8 : vector<8x1xf32>
    %15 = arith.subf %13, %14 : vector<8x1xf32>
    %cst_8 = arith.constant 0.000000e+00 : f32
    %16 = vector.broadcast %cst_8 : f32 to vector<8x1xf32>
    %17 = arith.maximumf %15, %16 : vector<8x1xf32>
    %18 = vector.broadcast %8 : vector<8x1xf32> to vector<8x32xf32>
    %19 = arith.subf %2, %18 : vector<8x32xf32>
    %cst_9 = arith.constant 9.99999996E-13 : f32
    %20 = vector.broadcast %cst_9 : f32 to vector<8x1xf32>
    %21 = arith.addf %17, %20 : vector<8x1xf32>
    %22 = math.rsqrt %21 : vector<8x1xf32>
    %23 = vector.broadcast %22 : vector<8x1xf32> to vector<8x32xf32>
    %24 = arith.mulf %19, %23 : vector<8x32xf32>
    %25 = vector.broadcast %3 : vector<1x32xf32> to vector<8x32xf32>
    %26 = arith.mulf %24, %25 : vector<8x32xf32>
    %27 = vector.broadcast %4 : vector<1x32xf32> to vector<8x32xf32>
    %28 = arith.addf %26, %27 : vector<8x32xf32>
    %29 = arith.truncf %28 : vector<8x32xf32> to vector<8x32xbf16>
    %cst_10 = arith.constant 0.000000e+00 : f32
    %30 = vector.broadcast %cst_10 : f32 to vector<8x32xf32>
    %c0_11 = arith.constant 0 : index
    %c0_12 = arith.constant 0 : index
    %c0_13 = arith.constant 0 : index
    %31 = vector.load %arg2[%c0_11, %c0_12, %c0_13] : memref<2x32x192xbf16, #tpu.memory_space<vmem>>, vector<1x32x16xbf16>
    %32 = vector.shape_cast %31 : vector<1x32x16xbf16> to vector<32x16xbf16>
    %cst_14 = arith.constant dense<0.000000e+00> : vector<8x16xf32>
    %33 = tpu.matmul %29, %32, %cst_14 {dimension_numbers = #tpu.dot_dimension_numbers<[1], [0], [0], [1], [0, 0, 1, 1], [], []>} : vector<8x32xbf16>, vector<32x16xbf16>, vector<8x16xf32> -> vector<8x16xf32>
    %c0_15 = arith.constant 0 : index
    %c0_16 = arith.constant 0 : index
    %c0_17 = arith.constant 0 : index
    %34 = vector.load %arg4[%c0_15, %c0_16, %c0_17] : memref<2x8x96xf32, #tpu.memory_space<vmem>>, vector<1x1x16xf32>
    %35 = vector.shape_cast %34 : vector<1x1x16xf32> to vector<1x16xf32>
    %36 = vector.broadcast %35 : vector<1x16xf32> to vector<8x16xf32>
    %37 = arith.addf %33, %36 : vector<8x16xf32>
    %c0_18 = arith.constant 0 : index
    %c0_19 = arith.constant 0 : index
    %c32 = arith.constant 32 : index
    %38 = vector.load %arg2[%c0_18, %c0_19, %c32] : memref<2x32x192xbf16, #tpu.memory_space<vmem>>, vector<1x32x16xbf16>
    %39 = vector.shape_cast %38 : vector<1x32x16xbf16> to vector<32x16xbf16>
    %cst_20 = arith.constant dense<0.000000e+00> : vector<8x16xf32>
    %40 = tpu.matmul %29, %39, %cst_20 {dimension_numbers = #tpu.dot_dimension_numbers<[1], [0], [0], [1], [0, 0, 1, 1], [], []>} : vector<8x32xbf16>, vector<32x16xbf16>, vector<8x16xf32> -> vector<8x16xf32>
    %c0_21 = arith.constant 0 : index
    %c0_22 = arith.constant 0 : index
    %c32_23 = arith.constant 32 : index
    %41 = vector.load %arg4[%c0_21, %c0_22, %c32_23] : memref<2x8x96xf32, #tpu.memory_space<vmem>>, vector<1x1x16xf32>
    %42 = vector.shape_cast %41 : vector<1x1x16xf32> to vector<1x16xf32>
    %43 = vector.broadcast %42 : vector<1x16xf32> to vector<8x16xf32>
    %44 = arith.addf %40, %43 : vector<8x16xf32>
    %c0_24 = arith.constant 0 : index
    %c0_25 = arith.constant 0 : index
    %c64 = arith.constant 64 : index
    %45 = vector.load %arg2[%c0_24, %c0_25, %c64] : memref<2x32x192xbf16, #tpu.memory_space<vmem>>, vector<1x32x16xbf16>
    %46 = vector.shape_cast %45 : vector<1x32x16xbf16> to vector<32x16xbf16>
    %cst_26 = arith.constant dense<0.000000e+00> : vector<8x16xf32>
    %47 = tpu.matmul %29, %46, %cst_26 {dimension_numbers = #tpu.dot_dimension_numbers<[1], [0], [0], [1], [0, 0, 1, 1], [], []>} : vector<8x32xbf16>, vector<32x16xbf16>, vector<8x16xf32> -> vector<8x16xf32>
    %c0_27 = arith.constant 0 : index
    %c0_28 = arith.constant 0 : index
    %c64_29 = arith.constant 64 : index
    %48 = vector.load %arg4[%c0_27, %c0_28, %c64_29] : memref<2x8x96xf32, #tpu.memory_space<vmem>>, vector<1x1x16xf32>
    %49 = vector.shape_cast %48 : vector<1x1x16xf32> to vector<1x16xf32>
    %50 = vector.broadcast %49 : vector<1x16xf32> to vector<8x16xf32>
    %51 = arith.addf %47, %50 : vector<8x16xf32>
    %52 = arith.truncf %37 : vector<8x16xf32> to vector<8x16xbf16>
    %53 = arith.truncf %44 : vector<8x16xf32> to vector<8x16xbf16>
    %cst_30 = arith.constant dense<0.000000e+00> : vector<8x8xf32>
    %54 = tpu.matmul %52, %53, %cst_30 {dimension_numbers = #tpu.dot_dimension_numbers<[1], [1], [0], [0], [0, 0, 1, 0], [], []>} : vector<8x16xbf16>, vector<8x16xbf16>, vector<8x8xf32> -> vector<8x8xf32>
    %cst_31 = arith.constant 2.500000e-01 : f32
    %55 = vector.broadcast %cst_31 : f32 to vector<8x8xf32>
    %56 = arith.mulf %54, %55 : vector<8x8xf32>
    %cst_32 = arith.constant dense<0xFF800000> : vector<8xf32>
    %57 = vector.multi_reduction <maximumf>, %56, %cst_32 [1] : vector<8x8xf32> to vector<8xf32>
    %58 = vector.shape_cast %57 : vector<8xf32> to vector<8x1xf32>
    %59 = vector.broadcast %58 : vector<8x1xf32> to vector<8x8xf32>
    %60 = arith.subf %56, %59 : vector<8x8xf32>
    %61 = math.exp %60 : vector<8x8xf32>
    %cst_33 = arith.constant dense<0.000000e+00> : vector<8xf32>
    %62 = vector.multi_reduction <add>, %61, %cst_33 [1] : vector<8x8xf32> to vector<8xf32>
    %63 = vector.shape_cast %62 : vector<8xf32> to vector<8x1xf32>
    %64 = tpu.reciprocal %63 {approx = true} : vector<8x1xf32> -> vector<8x1xf32>
    %65 = vector.broadcast %64 : vector<8x1xf32> to vector<8x8xf32>
    %66 = arith.mulf %61, %65 : vector<8x8xf32>
    %67 = arith.truncf %66 : vector<8x8xf32> to vector<8x8xbf16>
    %68 = arith.truncf %51 : vector<8x16xf32> to vector<8x16xbf16>
    %cst_34 = arith.constant dense<0.000000e+00> : vector<8x16xf32>
    %69 = tpu.matmul %67, %68, %cst_34 {dimension_numbers = #tpu.dot_dimension_numbers<[1], [0], [0], [1], [0, 0, 1, 1], [], []>} : vector<8x8xbf16>, vector<8x16xbf16>, vector<8x16xf32> -> vector<8x16xf32>
    %70 = arith.truncf %69 : vector<8x16xf32> to vector<8x16xbf16>
    %c0_35 = arith.constant 0 : index
    %c0_36 = arith.constant 0 : index
    %c96 = arith.constant 96 : index
    %71 = vector.load %arg2[%c0_35, %c0_36, %c96] : memref<2x32x192xbf16, #tpu.memory_space<vmem>>, vector<1x16x32xbf16>
    %72 = vector.shape_cast %71 : vector<1x16x32xbf16> to vector<16x32xbf16>
    %cst_37 = arith.constant dense<0.000000e+00> : vector<8x32xf32>
    %73 = tpu.matmul %70, %72, %cst_37 {dimension_numbers = #tpu.dot_dimension_numbers<[1], [0], [0], [1], [0, 0, 1, 1], [], []>} : vector<8x16xbf16>, vector<16x32xbf16>, vector<8x32xf32> -> vector<8x32xf32>
    %74 = arith.addf %30, %73 : vector<8x32xf32>
    %c0_38 = arith.constant 0 : index
    %c0_39 = arith.constant 0 : index
    %c16 = arith.constant 16 : index
    %75 = vector.load %arg2[%c0_38, %c0_39, %c16] : memref<2x32x192xbf16, #tpu.memory_space<vmem>>, vector<1x32x16xbf16>
    %76 = vector.shape_cast %75 : vector<1x32x16xbf16> to vector<32x16xbf16>
    %cst_40 = arith.constant dense<0.000000e+00> : vector<8x16xf32>
    %77 = tpu.matmul %29, %76, %cst_40 {dimension_numbers = #tpu.dot_dimension_numbers<[1], [0], [0], [1], [0, 0, 1, 1], [], []>} : vector<8x32xbf16>, vector<32x16xbf16>, vector<8x16xf32> -> vector<8x16xf32>
    %c0_41 = arith.constant 0 : index
    %c0_42 = arith.constant 0 : index
    %c16_43 = arith.constant 16 : index
    %78 = vector.load %arg4[%c0_41, %c0_42, %c16_43] : memref<2x8x96xf32, #tpu.memory_space<vmem>>, vector<1x1x16xf32>
    %79 = vector.shape_cast %78 : vector<1x1x16xf32> to vector<1x16xf32>
    %80 = vector.broadcast %79 : vector<1x16xf32> to vector<8x16xf32>
    %81 = arith.addf %77, %80 : vector<8x16xf32>
    %c0_44 = arith.constant 0 : index
    %c0_45 = arith.constant 0 : index
    %c48 = arith.constant 48 : index
    %82 = vector.load %arg2[%c0_44, %c0_45, %c48] : memref<2x32x192xbf16, #tpu.memory_space<vmem>>, vector<1x32x16xbf16>
    %83 = vector.shape_cast %82 : vector<1x32x16xbf16> to vector<32x16xbf16>
    %cst_46 = arith.constant dense<0.000000e+00> : vector<8x16xf32>
    %84 = tpu.matmul %29, %83, %cst_46 {dimension_numbers = #tpu.dot_dimension_numbers<[1], [0], [0], [1], [0, 0, 1, 1], [], []>} : vector<8x32xbf16>, vector<32x16xbf16>, vector<8x16xf32> -> vector<8x16xf32>
    %c0_47 = arith.constant 0 : index
    %c0_48 = arith.constant 0 : index
    %c48_49 = arith.constant 48 : index
    %85 = vector.load %arg4[%c0_47, %c0_48, %c48_49] : memref<2x8x96xf32, #tpu.memory_space<vmem>>, vector<1x1x16xf32>
    %86 = vector.shape_cast %85 : vector<1x1x16xf32> to vector<1x16xf32>
    %87 = vector.broadcast %86 : vector<1x16xf32> to vector<8x16xf32>
    %88 = arith.addf %84, %87 : vector<8x16xf32>
    %c0_50 = arith.constant 0 : index
    %c0_51 = arith.constant 0 : index
    %c80 = arith.constant 80 : index
    %89 = vector.load %arg2[%c0_50, %c0_51, %c80] : memref<2x32x192xbf16, #tpu.memory_space<vmem>>, vector<1x32x16xbf16>
    %90 = vector.shape_cast %89 : vector<1x32x16xbf16> to vector<32x16xbf16>
    %cst_52 = arith.constant dense<0.000000e+00> : vector<8x16xf32>
    %91 = tpu.matmul %29, %90, %cst_52 {dimension_numbers = #tpu.dot_dimension_numbers<[1], [0], [0], [1], [0, 0, 1, 1], [], []>} : vector<8x32xbf16>, vector<32x16xbf16>, vector<8x16xf32> -> vector<8x16xf32>
    %c0_53 = arith.constant 0 : index
    %c0_54 = arith.constant 0 : index
    %c80_55 = arith.constant 80 : index
    %92 = vector.load %arg4[%c0_53, %c0_54, %c80_55] : memref<2x8x96xf32, #tpu.memory_space<vmem>>, vector<1x1x16xf32>
    %93 = vector.shape_cast %92 : vector<1x1x16xf32> to vector<1x16xf32>
    %94 = vector.broadcast %93 : vector<1x16xf32> to vector<8x16xf32>
    %95 = arith.addf %91, %94 : vector<8x16xf32>
    %96 = arith.truncf %81 : vector<8x16xf32> to vector<8x16xbf16>
    %97 = arith.truncf %88 : vector<8x16xf32> to vector<8x16xbf16>
    %cst_56 = arith.constant dense<0.000000e+00> : vector<8x8xf32>
    %98 = tpu.matmul %96, %97, %cst_56 {dimension_numbers = #tpu.dot_dimension_numbers<[1], [1], [0], [0], [0, 0, 1, 0], [], []>} : vector<8x16xbf16>, vector<8x16xbf16>, vector<8x8xf32> -> vector<8x8xf32>
    %cst_57 = arith.constant 2.500000e-01 : f32
    %99 = vector.broadcast %cst_57 : f32 to vector<8x8xf32>
    %100 = arith.mulf %98, %99 : vector<8x8xf32>
    %cst_58 = arith.constant dense<0xFF800000> : vector<8xf32>
    %101 = vector.multi_reduction <maximumf>, %100, %cst_58 [1] : vector<8x8xf32> to vector<8xf32>
    %102 = vector.shape_cast %101 : vector<8xf32> to vector<8x1xf32>
    %103 = vector.broadcast %102 : vector<8x1xf32> to vector<8x8xf32>
    %104 = arith.subf %100, %103 : vector<8x8xf32>
    %105 = math.exp %104 : vector<8x8xf32>
    %cst_59 = arith.constant dense<0.000000e+00> : vector<8xf32>
    %106 = vector.multi_reduction <add>, %105, %cst_59 [1] : vector<8x8xf32> to vector<8xf32>
    %107 = vector.shape_cast %106 : vector<8xf32> to vector<8x1xf32>
    %108 = tpu.reciprocal %107 {approx = true} : vector<8x1xf32> -> vector<8x1xf32>
    %109 = vector.broadcast %108 : vector<8x1xf32> to vector<8x8xf32>
    %110 = arith.mulf %105, %109 : vector<8x8xf32>
    %111 = arith.truncf %110 : vector<8x8xf32> to vector<8x8xbf16>
    %112 = arith.truncf %95 : vector<8x16xf32> to vector<8x16xbf16>
    %cst_60 = arith.constant dense<0.000000e+00> : vector<8x16xf32>
    %113 = tpu.matmul %111, %112, %cst_60 {dimension_numbers = #tpu.dot_dimension_numbers<[1], [0], [0], [1], [0, 0, 1, 1], [], []>} : vector<8x8xbf16>, vector<8x16xbf16>, vector<8x16xf32> -> vector<8x16xf32>
    %114 = arith.truncf %113 : vector<8x16xf32> to vector<8x16xbf16>
    %c0_61 = arith.constant 0 : index
    %c16_62 = arith.constant 16 : index
    %c96_63 = arith.constant 96 : index
    %115 = vector.load %arg2[%c0_61, %c16_62, %c96_63] : memref<2x32x192xbf16, #tpu.memory_space<vmem>>, vector<1x16x32xbf16>
    %116 = vector.shape_cast %115 : vector<1x16x32xbf16> to vector<16x32xbf16>
    %cst_64 = arith.constant dense<0.000000e+00> : vector<8x32xf32>
    %117 = tpu.matmul %114, %116, %cst_64 {dimension_numbers = #tpu.dot_dimension_numbers<[1], [0], [0], [1], [0, 0, 1, 1], [], []>} : vector<8x16xbf16>, vector<16x32xbf16>, vector<8x32xf32> -> vector<8x32xf32>
    %118 = arith.addf %74, %117 : vector<8x32xf32>
    %c0_65 = arith.constant 0 : index
    %c2 = arith.constant 2 : index
    %c0_66 = arith.constant 0 : index
    %119 = vector.load %arg4[%c0_65, %c2, %c0_66] : memref<2x8x96xf32, #tpu.memory_space<vmem>>, vector<1x1x32xf32>
    %120 = vector.shape_cast %119 : vector<1x1x32xf32> to vector<1x32xf32>
    %121 = vector.broadcast %120 : vector<1x32xf32> to vector<8x32xf32>
    %122 = arith.addf %118, %121 : vector<8x32xf32>
    %123 = arith.addf %122, %28 : vector<8x32xf32>
    %c0_67 = arith.constant 0 : index
    %c4 = arith.constant 4 : index
    %c0_68 = arith.constant 0 : index
    %124 = vector.load %arg4[%c0_67, %c4, %c0_68] : memref<2x8x96xf32, #tpu.memory_space<vmem>>, vector<1x1x32xf32>
    %125 = vector.shape_cast %124 : vector<1x1x32xf32> to vector<1x32xf32>
    %c0_69 = arith.constant 0 : index
    %c5 = arith.constant 5 : index
    %c0_70 = arith.constant 0 : index
    %126 = vector.load %arg4[%c0_69, %c5, %c0_70] : memref<2x8x96xf32, #tpu.memory_space<vmem>>, vector<1x1x32xf32>
    %127 = vector.shape_cast %126 : vector<1x1x32xf32> to vector<1x32xf32>
    %cst_71 = arith.constant dense<0.000000e+00> : vector<8xf32>
    %128 = vector.multi_reduction <add>, %123, %cst_71 [1] : vector<8x32xf32> to vector<8xf32>
    %129 = vector.shape_cast %128 : vector<8xf32> to vector<8x1xf32>
    %cst_72 = arith.constant 3.200000e+01 : f32
    %130 = vector.broadcast %cst_72 : f32 to vector<8x1xf32>
    %131 = arith.divf %129, %130 : vector<8x1xf32>
    %132 = arith.mulf %123, %123 : vector<8x32xf32>
    %cst_73 = arith.constant dense<0.000000e+00> : vector<8xf32>
    %133 = vector.multi_reduction <add>, %132, %cst_73 [1] : vector<8x32xf32> to vector<8xf32>
    %134 = vector.shape_cast %133 : vector<8xf32> to vector<8x1xf32>
    %cst_74 = arith.constant 3.200000e+01 : f32
    %135 = vector.broadcast %cst_74 : f32 to vector<8x1xf32>
    %136 = arith.divf %134, %135 : vector<8x1xf32>
    %137 = arith.mulf %131, %131 : vector<8x1xf32>
    %138 = arith.subf %136, %137 : vector<8x1xf32>
    %cst_75 = arith.constant 0.000000e+00 : f32
    %139 = vector.broadcast %cst_75 : f32 to vector<8x1xf32>
    %140 = arith.maximumf %138, %139 : vector<8x1xf32>
    %141 = vector.broadcast %131 : vector<8x1xf32> to vector<8x32xf32>
    %142 = arith.subf %123, %141 : vector<8x32xf32>
    %cst_76 = arith.constant 9.99999996E-13 : f32
    %143 = vector.broadcast %cst_76 : f32 to vector<8x1xf32>
    %144 = arith.addf %140, %143 : vector<8x1xf32>
    %145 = math.rsqrt %144 : vector<8x1xf32>
    %146 = vector.broadcast %145 : vector<8x1xf32> to vector<8x32xf32>
    %147 = arith.mulf %142, %146 : vector<8x32xf32>
    %148 = vector.broadcast %125 : vector<1x32xf32> to vector<8x32xf32>
    %149 = arith.mulf %147, %148 : vector<8x32xf32>
    %150 = vector.broadcast %127 : vector<1x32xf32> to vector<8x32xf32>
    %151 = arith.addf %149, %150 : vector<8x32xf32>
    %152 = arith.truncf %151 : vector<8x32xf32> to vector<8x32xbf16>
    %c0_77 = arith.constant 0 : index
    %c0_78 = arith.constant 0 : index
    %c128 = arith.constant 128 : index
    %153 = vector.load %arg2[%c0_77, %c0_78, %c128] : memref<2x32x192xbf16, #tpu.memory_space<vmem>>, vector<1x32x64xbf16>
    %154 = vector.shape_cast %153 : vector<1x32x64xbf16> to vector<32x64xbf16>
    %cst_79 = arith.constant dense<0.000000e+00> : vector<8x64xf32>
    %155 = tpu.matmul %152, %154, %cst_79 {dimension_numbers = #tpu.dot_dimension_numbers<[1], [0], [0], [1], [0, 0, 1, 1], [], []>} : vector<8x32xbf16>, vector<32x64xbf16>, vector<8x64xf32> -> vector<8x64xf32>
    %c0_80 = arith.constant 0 : index
    %c1 = arith.constant 1 : index
    %c0_81 = arith.constant 0 : index
    %156 = vector.load %arg4[%c0_80, %c1, %c0_81] : memref<2x8x96xf32, #tpu.memory_space<vmem>>, vector<1x1x64xf32>
    %157 = vector.shape_cast %156 : vector<1x1x64xf32> to vector<1x64xf32>
    %158 = vector.broadcast %157 : vector<1x64xf32> to vector<8x64xf32>
    %159 = arith.addf %155, %158 : vector<8x64xf32>
    %cst_82 = arith.constant 5.000000e-01 : f32
    %160 = vector.broadcast %cst_82 : f32 to vector<8x64xf32>
    %161 = arith.mulf %160, %159 : vector<8x64xf32>
    %cst_83 = arith.constant 4.471500e-02 : f32
    %162 = vector.broadcast %cst_83 : f32 to vector<8x64xf32>
    %163 = arith.mulf %162, %159 : vector<8x64xf32>
    %164 = arith.mulf %163, %159 : vector<8x64xf32>
    %165 = arith.mulf %164, %159 : vector<8x64xf32>
    %166 = arith.addf %159, %165 : vector<8x64xf32>
    %cst_84 = arith.constant 0.797884583 : f32
    %167 = vector.broadcast %cst_84 : f32 to vector<8x64xf32>
    %168 = arith.mulf %167, %166 : vector<8x64xf32>
    %169 = math.tanh %168 : vector<8x64xf32>
    %cst_85 = arith.constant 1.000000e+00 : f32
    %170 = vector.broadcast %cst_85 : f32 to vector<8x64xf32>
    %171 = arith.addf %170, %169 : vector<8x64xf32>
    %172 = arith.mulf %161, %171 : vector<8x64xf32>
    %173 = arith.truncf %172 : vector<8x64xf32> to vector<8x64xbf16>
    %c0_86 = arith.constant 0 : index
    %c0_87 = arith.constant 0 : index
    %c0_88 = arith.constant 0 : index
    %174 = vector.load %arg3[%c0_86, %c0_87, %c0_88] : memref<2x64x32xbf16, #tpu.memory_space<vmem>>, vector<1x64x32xbf16>
    %175 = vector.shape_cast %174 : vector<1x64x32xbf16> to vector<64x32xbf16>
    %cst_89 = arith.constant dense<0.000000e+00> : vector<8x32xf32>
    %176 = tpu.matmul %173, %175, %cst_89 {dimension_numbers = #tpu.dot_dimension_numbers<[1], [0], [0], [1], [0, 0, 1, 1], [], []>} : vector<8x64xbf16>, vector<64x32xbf16>, vector<8x32xf32> -> vector<8x32xf32>
    %c0_90 = arith.constant 0 : index
    %c3 = arith.constant 3 : index
    %c0_91 = arith.constant 0 : index
    %177 = vector.load %arg4[%c0_90, %c3, %c0_91] : memref<2x8x96xf32, #tpu.memory_space<vmem>>, vector<1x1x32xf32>
    %178 = vector.shape_cast %177 : vector<1x1x32xf32> to vector<1x32xf32>
    %179 = vector.broadcast %178 : vector<1x32xf32> to vector<8x32xf32>
    %180 = arith.addf %176, %179 : vector<8x32xf32>
    %181 = arith.addf %180, %151 : vector<8x32xf32>
    %c0_92 = arith.constant 0 : index
    %c6 = arith.constant 6 : index
    %c0_93 = arith.constant 0 : index
    %182 = vector.load %arg4[%c0_92, %c6, %c0_93] : memref<2x8x96xf32, #tpu.memory_space<vmem>>, vector<1x1x32xf32>
    %183 = vector.shape_cast %182 : vector<1x1x32xf32> to vector<1x32xf32>
    %c0_94 = arith.constant 0 : index
    %c7 = arith.constant 7 : index
    %c0_95 = arith.constant 0 : index
    %184 = vector.load %arg4[%c0_94, %c7, %c0_95] : memref<2x8x96xf32, #tpu.memory_space<vmem>>, vector<1x1x32xf32>
    %185 = vector.shape_cast %184 : vector<1x1x32xf32> to vector<1x32xf32>
    %cst_96 = arith.constant dense<0.000000e+00> : vector<8xf32>
    %186 = vector.multi_reduction <add>, %181, %cst_96 [1] : vector<8x32xf32> to vector<8xf32>
    %187 = vector.shape_cast %186 : vector<8xf32> to vector<8x1xf32>
    %cst_97 = arith.constant 3.200000e+01 : f32
    %188 = vector.broadcast %cst_97 : f32 to vector<8x1xf32>
    %189 = arith.divf %187, %188 : vector<8x1xf32>
    %190 = arith.mulf %181, %181 : vector<8x32xf32>
    %cst_98 = arith.constant dense<0.000000e+00> : vector<8xf32>
    %191 = vector.multi_reduction <add>, %190, %cst_98 [1] : vector<8x32xf32> to vector<8xf32>
    %192 = vector.shape_cast %191 : vector<8xf32> to vector<8x1xf32>
    %cst_99 = arith.constant 3.200000e+01 : f32
    %193 = vector.broadcast %cst_99 : f32 to vector<8x1xf32>
    %194 = arith.divf %192, %193 : vector<8x1xf32>
    %195 = arith.mulf %189, %189 : vector<8x1xf32>
    %196 = arith.subf %194, %195 : vector<8x1xf32>
    %cst_100 = arith.constant 0.000000e+00 : f32
    %197 = vector.broadcast %cst_100 : f32 to vector<8x1xf32>
    %198 = arith.maximumf %196, %197 : vector<8x1xf32>
    %199 = vector.broadcast %189 : vector<8x1xf32> to vector<8x32xf32>
    %200 = arith.subf %181, %199 : vector<8x32xf32>
    %cst_101 = arith.constant 9.99999996E-13 : f32
    %201 = vector.broadcast %cst_101 : f32 to vector<8x1xf32>
    %202 = arith.addf %198, %201 : vector<8x1xf32>
    %203 = math.rsqrt %202 : vector<8x1xf32>
    %204 = vector.broadcast %203 : vector<8x1xf32> to vector<8x32xf32>
    %205 = arith.mulf %200, %204 : vector<8x32xf32>
    %206 = vector.broadcast %183 : vector<1x32xf32> to vector<8x32xf32>
    %207 = arith.mulf %205, %206 : vector<8x32xf32>
    %208 = vector.broadcast %185 : vector<1x32xf32> to vector<8x32xf32>
    %209 = arith.addf %207, %208 : vector<8x32xf32>
    %210 = arith.truncf %209 : vector<8x32xf32> to vector<8x32xbf16>
    %cst_102 = arith.constant 0.000000e+00 : f32
    %211 = vector.broadcast %cst_102 : f32 to vector<8x32xf32>
    %c1_103 = arith.constant 1 : index
    %c0_104 = arith.constant 0 : index
    %c0_105 = arith.constant 0 : index
    %212 = vector.load %arg2[%c1_103, %c0_104, %c0_105] : memref<2x32x192xbf16, #tpu.memory_space<vmem>>, vector<1x32x16xbf16>
    %213 = vector.shape_cast %212 : vector<1x32x16xbf16> to vector<32x16xbf16>
    %cst_106 = arith.constant dense<0.000000e+00> : vector<8x16xf32>
    %214 = tpu.matmul %210, %213, %cst_106 {dimension_numbers = #tpu.dot_dimension_numbers<[1], [0], [0], [1], [0, 0, 1, 1], [], []>} : vector<8x32xbf16>, vector<32x16xbf16>, vector<8x16xf32> -> vector<8x16xf32>
    %c1_107 = arith.constant 1 : index
    %c0_108 = arith.constant 0 : index
    %c0_109 = arith.constant 0 : index
    %215 = vector.load %arg4[%c1_107, %c0_108, %c0_109] : memref<2x8x96xf32, #tpu.memory_space<vmem>>, vector<1x1x16xf32>
    %216 = vector.shape_cast %215 : vector<1x1x16xf32> to vector<1x16xf32>
    %217 = vector.broadcast %216 : vector<1x16xf32> to vector<8x16xf32>
    %218 = arith.addf %214, %217 : vector<8x16xf32>
    %c1_110 = arith.constant 1 : index
    %c0_111 = arith.constant 0 : index
    %c32_112 = arith.constant 32 : index
    %219 = vector.load %arg2[%c1_110, %c0_111, %c32_112] : memref<2x32x192xbf16, #tpu.memory_space<vmem>>, vector<1x32x16xbf16>
    %220 = vector.shape_cast %219 : vector<1x32x16xbf16> to vector<32x16xbf16>
    %cst_113 = arith.constant dense<0.000000e+00> : vector<8x16xf32>
    %221 = tpu.matmul %210, %220, %cst_113 {dimension_numbers = #tpu.dot_dimension_numbers<[1], [0], [0], [1], [0, 0, 1, 1], [], []>} : vector<8x32xbf16>, vector<32x16xbf16>, vector<8x16xf32> -> vector<8x16xf32>
    %c1_114 = arith.constant 1 : index
    %c0_115 = arith.constant 0 : index
    %c32_116 = arith.constant 32 : index
    %222 = vector.load %arg4[%c1_114, %c0_115, %c32_116] : memref<2x8x96xf32, #tpu.memory_space<vmem>>, vector<1x1x16xf32>
    %223 = vector.shape_cast %222 : vector<1x1x16xf32> to vector<1x16xf32>
    %224 = vector.broadcast %223 : vector<1x16xf32> to vector<8x16xf32>
    %225 = arith.addf %221, %224 : vector<8x16xf32>
    %c1_117 = arith.constant 1 : index
    %c0_118 = arith.constant 0 : index
    %c64_119 = arith.constant 64 : index
    %226 = vector.load %arg2[%c1_117, %c0_118, %c64_119] : memref<2x32x192xbf16, #tpu.memory_space<vmem>>, vector<1x32x16xbf16>
    %227 = vector.shape_cast %226 : vector<1x32x16xbf16> to vector<32x16xbf16>
    %cst_120 = arith.constant dense<0.000000e+00> : vector<8x16xf32>
    %228 = tpu.matmul %210, %227, %cst_120 {dimension_numbers = #tpu.dot_dimension_numbers<[1], [0], [0], [1], [0, 0, 1, 1], [], []>} : vector<8x32xbf16>, vector<32x16xbf16>, vector<8x16xf32> -> vector<8x16xf32>
    %c1_121 = arith.constant 1 : index
    %c0_122 = arith.constant 0 : index
    %c64_123 = arith.constant 64 : index
    %229 = vector.load %arg4[%c1_121, %c0_122, %c64_123] : memref<2x8x96xf32, #tpu.memory_space<vmem>>, vector<1x1x16xf32>
    %230 = vector.shape_cast %229 : vector<1x1x16xf32> to vector<1x16xf32>
    %231 = vector.broadcast %230 : vector<1x16xf32> to vector<8x16xf32>
    %232 = arith.addf %228, %231 : vector<8x16xf32>
    %233 = arith.truncf %218 : vector<8x16xf32> to vector<8x16xbf16>
    %234 = arith.truncf %225 : vector<8x16xf32> to vector<8x16xbf16>
    %cst_124 = arith.constant dense<0.000000e+00> : vector<8x8xf32>
    %235 = tpu.matmul %233, %234, %cst_124 {dimension_numbers = #tpu.dot_dimension_numbers<[1], [1], [0], [0], [0, 0, 1, 0], [], []>} : vector<8x16xbf16>, vector<8x16xbf16>, vector<8x8xf32> -> vector<8x8xf32>
    %cst_125 = arith.constant 2.500000e-01 : f32
    %236 = vector.broadcast %cst_125 : f32 to vector<8x8xf32>
    %237 = arith.mulf %235, %236 : vector<8x8xf32>
    %cst_126 = arith.constant dense<0xFF800000> : vector<8xf32>
    %238 = vector.multi_reduction <maximumf>, %237, %cst_126 [1] : vector<8x8xf32> to vector<8xf32>
    %239 = vector.shape_cast %238 : vector<8xf32> to vector<8x1xf32>
    %240 = vector.broadcast %239 : vector<8x1xf32> to vector<8x8xf32>
    %241 = arith.subf %237, %240 : vector<8x8xf32>
    %242 = math.exp %241 : vector<8x8xf32>
    %cst_127 = arith.constant dense<0.000000e+00> : vector<8xf32>
    %243 = vector.multi_reduction <add>, %242, %cst_127 [1] : vector<8x8xf32> to vector<8xf32>
    %244 = vector.shape_cast %243 : vector<8xf32> to vector<8x1xf32>
    %245 = tpu.reciprocal %244 {approx = true} : vector<8x1xf32> -> vector<8x1xf32>
    %246 = vector.broadcast %245 : vector<8x1xf32> to vector<8x8xf32>
    %247 = arith.mulf %242, %246 : vector<8x8xf32>
    %248 = arith.truncf %247 : vector<8x8xf32> to vector<8x8xbf16>
    %249 = arith.truncf %232 : vector<8x16xf32> to vector<8x16xbf16>
    %cst_128 = arith.constant dense<0.000000e+00> : vector<8x16xf32>
    %250 = tpu.matmul %248, %249, %cst_128 {dimension_numbers = #tpu.dot_dimension_numbers<[1], [0], [0], [1], [0, 0, 1, 1], [], []>} : vector<8x8xbf16>, vector<8x16xbf16>, vector<8x16xf32> -> vector<8x16xf32>
    %251 = arith.truncf %250 : vector<8x16xf32> to vector<8x16xbf16>
    %c1_129 = arith.constant 1 : index
    %c0_130 = arith.constant 0 : index
    %c96_131 = arith.constant 96 : index
    %252 = vector.load %arg2[%c1_129, %c0_130, %c96_131] : memref<2x32x192xbf16, #tpu.memory_space<vmem>>, vector<1x16x32xbf16>
    %253 = vector.shape_cast %252 : vector<1x16x32xbf16> to vector<16x32xbf16>
    %cst_132 = arith.constant dense<0.000000e+00> : vector<8x32xf32>
    %254 = tpu.matmul %251, %253, %cst_132 {dimension_numbers = #tpu.dot_dimension_numbers<[1], [0], [0], [1], [0, 0, 1, 1], [], []>} : vector<8x16xbf16>, vector<16x32xbf16>, vector<8x32xf32> -> vector<8x32xf32>
    %255 = arith.addf %211, %254 : vector<8x32xf32>
    %c1_133 = arith.constant 1 : index
    %c0_134 = arith.constant 0 : index
    %c16_135 = arith.constant 16 : index
    %256 = vector.load %arg2[%c1_133, %c0_134, %c16_135] : memref<2x32x192xbf16, #tpu.memory_space<vmem>>, vector<1x32x16xbf16>
    %257 = vector.shape_cast %256 : vector<1x32x16xbf16> to vector<32x16xbf16>
    %cst_136 = arith.constant dense<0.000000e+00> : vector<8x16xf32>
    %258 = tpu.matmul %210, %257, %cst_136 {dimension_numbers = #tpu.dot_dimension_numbers<[1], [0], [0], [1], [0, 0, 1, 1], [], []>} : vector<8x32xbf16>, vector<32x16xbf16>, vector<8x16xf32> -> vector<8x16xf32>
    %c1_137 = arith.constant 1 : index
    %c0_138 = arith.constant 0 : index
    %c16_139 = arith.constant 16 : index
    %259 = vector.load %arg4[%c1_137, %c0_138, %c16_139] : memref<2x8x96xf32, #tpu.memory_space<vmem>>, vector<1x1x16xf32>
    %260 = vector.shape_cast %259 : vector<1x1x16xf32> to vector<1x16xf32>
    %261 = vector.broadcast %260 : vector<1x16xf32> to vector<8x16xf32>
    %262 = arith.addf %258, %261 : vector<8x16xf32>
    %c1_140 = arith.constant 1 : index
    %c0_141 = arith.constant 0 : index
    %c48_142 = arith.constant 48 : index
    %263 = vector.load %arg2[%c1_140, %c0_141, %c48_142] : memref<2x32x192xbf16, #tpu.memory_space<vmem>>, vector<1x32x16xbf16>
    %264 = vector.shape_cast %263 : vector<1x32x16xbf16> to vector<32x16xbf16>
    %cst_143 = arith.constant dense<0.000000e+00> : vector<8x16xf32>
    %265 = tpu.matmul %210, %264, %cst_143 {dimension_numbers = #tpu.dot_dimension_numbers<[1], [0], [0], [1], [0, 0, 1, 1], [], []>} : vector<8x32xbf16>, vector<32x16xbf16>, vector<8x16xf32> -> vector<8x16xf32>
    %c1_144 = arith.constant 1 : index
    %c0_145 = arith.constant 0 : index
    %c48_146 = arith.constant 48 : index
    %266 = vector.load %arg4[%c1_144, %c0_145, %c48_146] : memref<2x8x96xf32, #tpu.memory_space<vmem>>, vector<1x1x16xf32>
    %267 = vector.shape_cast %266 : vector<1x1x16xf32> to vector<1x16xf32>
    %268 = vector.broadcast %267 : vector<1x16xf32> to vector<8x16xf32>
    %269 = arith.addf %265, %268 : vector<8x16xf32>
    %c1_147 = arith.constant 1 : index
    %c0_148 = arith.constant 0 : index
    %c80_149 = arith.constant 80 : index
    %270 = vector.load %arg2[%c1_147, %c0_148, %c80_149] : memref<2x32x192xbf16, #tpu.memory_space<vmem>>, vector<1x32x16xbf16>
    %271 = vector.shape_cast %270 : vector<1x32x16xbf16> to vector<32x16xbf16>
    %cst_150 = arith.constant dense<0.000000e+00> : vector<8x16xf32>
    %272 = tpu.matmul %210, %271, %cst_150 {dimension_numbers = #tpu.dot_dimension_numbers<[1], [0], [0], [1], [0, 0, 1, 1], [], []>} : vector<8x32xbf16>, vector<32x16xbf16>, vector<8x16xf32> -> vector<8x16xf32>
    %c1_151 = arith.constant 1 : index
    %c0_152 = arith.constant 0 : index
    %c80_153 = arith.constant 80 : index
    %273 = vector.load %arg4[%c1_151, %c0_152, %c80_153] : memref<2x8x96xf32, #tpu.memory_space<vmem>>, vector<1x1x16xf32>
    %274 = vector.shape_cast %273 : vector<1x1x16xf32> to vector<1x16xf32>
    %275 = vector.broadcast %274 : vector<1x16xf32> to vector<8x16xf32>
    %276 = arith.addf %272, %275 : vector<8x16xf32>
    %277 = arith.truncf %262 : vector<8x16xf32> to vector<8x16xbf16>
    %278 = arith.truncf %269 : vector<8x16xf32> to vector<8x16xbf16>
    %cst_154 = arith.constant dense<0.000000e+00> : vector<8x8xf32>
    %279 = tpu.matmul %277, %278, %cst_154 {dimension_numbers = #tpu.dot_dimension_numbers<[1], [1], [0], [0], [0, 0, 1, 0], [], []>} : vector<8x16xbf16>, vector<8x16xbf16>, vector<8x8xf32> -> vector<8x8xf32>
    %cst_155 = arith.constant 2.500000e-01 : f32
    %280 = vector.broadcast %cst_155 : f32 to vector<8x8xf32>
    %281 = arith.mulf %279, %280 : vector<8x8xf32>
    %cst_156 = arith.constant dense<0xFF800000> : vector<8xf32>
    %282 = vector.multi_reduction <maximumf>, %281, %cst_156 [1] : vector<8x8xf32> to vector<8xf32>
    %283 = vector.shape_cast %282 : vector<8xf32> to vector<8x1xf32>
    %284 = vector.broadcast %283 : vector<8x1xf32> to vector<8x8xf32>
    %285 = arith.subf %281, %284 : vector<8x8xf32>
    %286 = math.exp %285 : vector<8x8xf32>
    %cst_157 = arith.constant dense<0.000000e+00> : vector<8xf32>
    %287 = vector.multi_reduction <add>, %286, %cst_157 [1] : vector<8x8xf32> to vector<8xf32>
    %288 = vector.shape_cast %287 : vector<8xf32> to vector<8x1xf32>
    %289 = tpu.reciprocal %288 {approx = true} : vector<8x1xf32> -> vector<8x1xf32>
    %290 = vector.broadcast %289 : vector<8x1xf32> to vector<8x8xf32>
    %291 = arith.mulf %286, %290 : vector<8x8xf32>
    %292 = arith.truncf %291 : vector<8x8xf32> to vector<8x8xbf16>
    %293 = arith.truncf %276 : vector<8x16xf32> to vector<8x16xbf16>
    %cst_158 = arith.constant dense<0.000000e+00> : vector<8x16xf32>
    %294 = tpu.matmul %292, %293, %cst_158 {dimension_numbers = #tpu.dot_dimension_numbers<[1], [0], [0], [1], [0, 0, 1, 1], [], []>} : vector<8x8xbf16>, vector<8x16xbf16>, vector<8x16xf32> -> vector<8x16xf32>
    %295 = arith.truncf %294 : vector<8x16xf32> to vector<8x16xbf16>
    %c1_159 = arith.constant 1 : index
    %c16_160 = arith.constant 16 : index
    %c96_161 = arith.constant 96 : index
    %296 = vector.load %arg2[%c1_159, %c16_160, %c96_161] : memref<2x32x192xbf16, #tpu.memory_space<vmem>>, vector<1x16x32xbf16>
    %297 = vector.shape_cast %296 : vector<1x16x32xbf16> to vector<16x32xbf16>
    %cst_162 = arith.constant dense<0.000000e+00> : vector<8x32xf32>
    %298 = tpu.matmul %295, %297, %cst_162 {dimension_numbers = #tpu.dot_dimension_numbers<[1], [0], [0], [1], [0, 0, 1, 1], [], []>} : vector<8x16xbf16>, vector<16x32xbf16>, vector<8x32xf32> -> vector<8x32xf32>
    %299 = arith.addf %255, %298 : vector<8x32xf32>
    %c1_163 = arith.constant 1 : index
    %c2_164 = arith.constant 2 : index
    %c0_165 = arith.constant 0 : index
    %300 = vector.load %arg4[%c1_163, %c2_164, %c0_165] : memref<2x8x96xf32, #tpu.memory_space<vmem>>, vector<1x1x32xf32>
    %301 = vector.shape_cast %300 : vector<1x1x32xf32> to vector<1x32xf32>
    %302 = vector.broadcast %301 : vector<1x32xf32> to vector<8x32xf32>
    %303 = arith.addf %299, %302 : vector<8x32xf32>
    %304 = arith.addf %303, %209 : vector<8x32xf32>
    %c1_166 = arith.constant 1 : index
    %c4_167 = arith.constant 4 : index
    %c0_168 = arith.constant 0 : index
    %305 = vector.load %arg4[%c1_166, %c4_167, %c0_168] : memref<2x8x96xf32, #tpu.memory_space<vmem>>, vector<1x1x32xf32>
    %306 = vector.shape_cast %305 : vector<1x1x32xf32> to vector<1x32xf32>
    %c1_169 = arith.constant 1 : index
    %c5_170 = arith.constant 5 : index
    %c0_171 = arith.constant 0 : index
    %307 = vector.load %arg4[%c1_169, %c5_170, %c0_171] : memref<2x8x96xf32, #tpu.memory_space<vmem>>, vector<1x1x32xf32>
    %308 = vector.shape_cast %307 : vector<1x1x32xf32> to vector<1x32xf32>
    %cst_172 = arith.constant dense<0.000000e+00> : vector<8xf32>
    %309 = vector.multi_reduction <add>, %304, %cst_172 [1] : vector<8x32xf32> to vector<8xf32>
    %310 = vector.shape_cast %309 : vector<8xf32> to vector<8x1xf32>
    %cst_173 = arith.constant 3.200000e+01 : f32
    %311 = vector.broadcast %cst_173 : f32 to vector<8x1xf32>
    %312 = arith.divf %310, %311 : vector<8x1xf32>
    %313 = arith.mulf %304, %304 : vector<8x32xf32>
    %cst_174 = arith.constant dense<0.000000e+00> : vector<8xf32>
    %314 = vector.multi_reduction <add>, %313, %cst_174 [1] : vector<8x32xf32> to vector<8xf32>
    %315 = vector.shape_cast %314 : vector<8xf32> to vector<8x1xf32>
    %cst_175 = arith.constant 3.200000e+01 : f32
    %316 = vector.broadcast %cst_175 : f32 to vector<8x1xf32>
    %317 = arith.divf %315, %316 : vector<8x1xf32>
    %318 = arith.mulf %312, %312 : vector<8x1xf32>
    %319 = arith.subf %317, %318 : vector<8x1xf32>
    %cst_176 = arith.constant 0.000000e+00 : f32
    %320 = vector.broadcast %cst_176 : f32 to vector<8x1xf32>
    %321 = arith.maximumf %319, %320 : vector<8x1xf32>
    %322 = vector.broadcast %312 : vector<8x1xf32> to vector<8x32xf32>
    %323 = arith.subf %304, %322 : vector<8x32xf32>
    %cst_177 = arith.constant 9.99999996E-13 : f32
    %324 = vector.broadcast %cst_177 : f32 to vector<8x1xf32>
    %325 = arith.addf %321, %324 : vector<8x1xf32>
    %326 = math.rsqrt %325 : vector<8x1xf32>
    %327 = vector.broadcast %326 : vector<8x1xf32> to vector<8x32xf32>
    %328 = arith.mulf %323, %327 : vector<8x32xf32>
    %329 = vector.broadcast %306 : vector<1x32xf32> to vector<8x32xf32>
    %330 = arith.mulf %328, %329 : vector<8x32xf32>
    %331 = vector.broadcast %308 : vector<1x32xf32> to vector<8x32xf32>
    %332 = arith.addf %330, %331 : vector<8x32xf32>
    %333 = arith.truncf %332 : vector<8x32xf32> to vector<8x32xbf16>
    %c1_178 = arith.constant 1 : index
    %c0_179 = arith.constant 0 : index
    %c128_180 = arith.constant 128 : index
    %334 = vector.load %arg2[%c1_178, %c0_179, %c128_180] : memref<2x32x192xbf16, #tpu.memory_space<vmem>>, vector<1x32x64xbf16>
    %335 = vector.shape_cast %334 : vector<1x32x64xbf16> to vector<32x64xbf16>
    %cst_181 = arith.constant dense<0.000000e+00> : vector<8x64xf32>
    %336 = tpu.matmul %333, %335, %cst_181 {dimension_numbers = #tpu.dot_dimension_numbers<[1], [0], [0], [1], [0, 0, 1, 1], [], []>} : vector<8x32xbf16>, vector<32x64xbf16>, vector<8x64xf32> -> vector<8x64xf32>
    %c1_182 = arith.constant 1 : index
    %c1_183 = arith.constant 1 : index
    %c0_184 = arith.constant 0 : index
    %337 = vector.load %arg4[%c1_182, %c1_183, %c0_184] : memref<2x8x96xf32, #tpu.memory_space<vmem>>, vector<1x1x64xf32>
    %338 = vector.shape_cast %337 : vector<1x1x64xf32> to vector<1x64xf32>
    %339 = vector.broadcast %338 : vector<1x64xf32> to vector<8x64xf32>
    %340 = arith.addf %336, %339 : vector<8x64xf32>
    %cst_185 = arith.constant 5.000000e-01 : f32
    %341 = vector.broadcast %cst_185 : f32 to vector<8x64xf32>
    %342 = arith.mulf %341, %340 : vector<8x64xf32>
    %cst_186 = arith.constant 4.471500e-02 : f32
    %343 = vector.broadcast %cst_186 : f32 to vector<8x64xf32>
    %344 = arith.mulf %343, %340 : vector<8x64xf32>
    %345 = arith.mulf %344, %340 : vector<8x64xf32>
    %346 = arith.mulf %345, %340 : vector<8x64xf32>
    %347 = arith.addf %340, %346 : vector<8x64xf32>
    %cst_187 = arith.constant 0.797884583 : f32
    %348 = vector.broadcast %cst_187 : f32 to vector<8x64xf32>
    %349 = arith.mulf %348, %347 : vector<8x64xf32>
    %350 = math.tanh %349 : vector<8x64xf32>
    %cst_188 = arith.constant 1.000000e+00 : f32
    %351 = vector.broadcast %cst_188 : f32 to vector<8x64xf32>
    %352 = arith.addf %351, %350 : vector<8x64xf32>
    %353 = arith.mulf %342, %352 : vector<8x64xf32>
    %354 = arith.truncf %353 : vector<8x64xf32> to vector<8x64xbf16>
    %c1_189 = arith.constant 1 : index
    %c0_190 = arith.constant 0 : index
    %c0_191 = arith.constant 0 : index
    %355 = vector.load %arg3[%c1_189, %c0_190, %c0_191] : memref<2x64x32xbf16, #tpu.memory_space<vmem>>, vector<1x64x32xbf16>
    %356 = vector.shape_cast %355 : vector<1x64x32xbf16> to vector<64x32xbf16>
    %cst_192 = arith.constant dense<0.000000e+00> : vector<8x32xf32>
    %357 = tpu.matmul %354, %356, %cst_192 {dimension_numbers = #tpu.dot_dimension_numbers<[1], [0], [0], [1], [0, 0, 1, 1], [], []>} : vector<8x64xbf16>, vector<64x32xbf16>, vector<8x32xf32> -> vector<8x32xf32>
    %c1_193 = arith.constant 1 : index
    %c3_194 = arith.constant 3 : index
    %c0_195 = arith.constant 0 : index
    %358 = vector.load %arg4[%c1_193, %c3_194, %c0_195] : memref<2x8x96xf32, #tpu.memory_space<vmem>>, vector<1x1x32xf32>
    %359 = vector.shape_cast %358 : vector<1x1x32xf32> to vector<1x32xf32>
    %360 = vector.broadcast %359 : vector<1x32xf32> to vector<8x32xf32>
    %361 = arith.addf %357, %360 : vector<8x32xf32>
    %362 = arith.addf %361, %332 : vector<8x32xf32>
    %c1_196 = arith.constant 1 : index
    %c6_197 = arith.constant 6 : index
    %c0_198 = arith.constant 0 : index
    %363 = vector.load %arg4[%c1_196, %c6_197, %c0_198] : memref<2x8x96xf32, #tpu.memory_space<vmem>>, vector<1x1x32xf32>
    %364 = vector.shape_cast %363 : vector<1x1x32xf32> to vector<1x32xf32>
    %c1_199 = arith.constant 1 : index
    %c7_200 = arith.constant 7 : index
    %c0_201 = arith.constant 0 : index
    %365 = vector.load %arg4[%c1_199, %c7_200, %c0_201] : memref<2x8x96xf32, #tpu.memory_space<vmem>>, vector<1x1x32xf32>
    %366 = vector.shape_cast %365 : vector<1x1x32xf32> to vector<1x32xf32>
    %cst_202 = arith.constant dense<0.000000e+00> : vector<8xf32>
    %367 = vector.multi_reduction <add>, %362, %cst_202 [1] : vector<8x32xf32> to vector<8xf32>
    %368 = vector.shape_cast %367 : vector<8xf32> to vector<8x1xf32>
    %cst_203 = arith.constant 3.200000e+01 : f32
    %369 = vector.broadcast %cst_203 : f32 to vector<8x1xf32>
    %370 = arith.divf %368, %369 : vector<8x1xf32>
    %371 = arith.mulf %362, %362 : vector<8x32xf32>
    %cst_204 = arith.constant dense<0.000000e+00> : vector<8xf32>
    %372 = vector.multi_reduction <add>, %371, %cst_204 [1] : vector<8x32xf32> to vector<8xf32>
    %373 = vector.shape_cast %372 : vector<8xf32> to vector<8x1xf32>
    %cst_205 = arith.constant 3.200000e+01 : f32
    %374 = vector.broadcast %cst_205 : f32 to vector<8x1xf32>
    %375 = arith.divf %373, %374 : vector<8x1xf32>
    %376 = arith.mulf %370, %370 : vector<8x1xf32>
    %377 = arith.subf %375, %376 : vector<8x1xf32>
    %cst_206 = arith.constant 0.000000e+00 : f32
    %378 = vector.broadcast %cst_206 : f32 to vector<8x1xf32>
    %379 = arith.maximumf %377, %378 : vector<8x1xf32>
    %380 = vector.broadcast %370 : vector<8x1xf32> to vector<8x32xf32>
    %381 = arith.subf %362, %380 : vector<8x32xf32>
    %cst_207 = arith.constant 9.99999996E-13 : f32
    %382 = vector.broadcast %cst_207 : f32 to vector<8x1xf32>
    %383 = arith.addf %379, %382 : vector<8x1xf32>
    %384 = math.rsqrt %383 : vector<8x1xf32>
    %385 = vector.broadcast %384 : vector<8x1xf32> to vector<8x32xf32>
    %386 = arith.mulf %381, %385 : vector<8x32xf32>
    %387 = vector.broadcast %364 : vector<1x32xf32> to vector<8x32xf32>
    %388 = arith.mulf %386, %387 : vector<8x32xf32>
    %389 = vector.broadcast %366 : vector<1x32xf32> to vector<8x32xf32>
    %390 = arith.addf %388, %389 : vector<8x32xf32>
    %c0_208 = arith.constant 0 : index
    %c0_209 = arith.constant 0 : index
    %391 = vector.load %arg5[%c0_208, %c0_209] : memref<8x32xf32, #tpu.memory_space<vmem>>, vector<8x32xf32>
    tpu.vector_store %arg5[%c0_208, %c0_209], %390 {strides = array<i32>} : memref<8x32xf32, #tpu.memory_space<vmem>>, vector<8x32xf32>,
    return
  }
}

</mosaic_0001>

<llo_original>
// kernel: tpu_custom_call.1
$region0: #{tpu_custom_call.1}
  #allocation0 [shape = 'u32[]', space=smem, size = 0x4, offset = 0x4, fixed_abs, tag = 'smem constant byte address 0x4 - core index']
  #allocation1 [shape = 'u32[144,128]{1,0:T(1,128)}', space=vmem, size = 0x12000, scoped, tag = 'internal scratch']
  %s0 = inlined_call_operand.hbm [shape: f32[8,32], index: 0, kind: input, shape index: {}]
  %s1 = inlined_call_operand.vmem [shape: f32[10,32], index: 1, kind: input, shape index: {}]
  %s2 = inlined_call_operand.vmem [shape: bf16[2,32,192], index: 2, kind: input, shape index: {}]
  %s3 = inlined_call_operand.vmem [shape: bf16[2,64,32], index: 3, kind: input, shape index: {}]
  %s4 = inlined_call_operand.vmem [shape: f32[2,8,96], index: 4, kind: input, shape index: {}]
  %s5 = inlined_call_operand.hbm [shape: f32[8,32], index: 5, kind: output, shape index: {}]
  %s6 = sld [smem:[#allocation0]]
  $region34: #{tpu_custom_call.1} parent=0
    _
  %s8 = ssub.s32 1, %s6
  %s9 = scalar_select 0, %s8, %s6
  $region1: #{tpu_custom_call.1} parent=0
    #allocation2 [shape = 'u8[4096]{0}', space=vmem, size = 0x1000, scoped, tag = 'input window, operand 0, single buffered']
    #allocation3 [shape = 's32[1]{0}', space=sflag, size = 0x4, scoped, tag = 'scoped memory for tpu_custom_call.1']
    #allocation4 [shape = 's32[1]{0}', space=sflag, size = 0x4, scoped, tag = 'scoped memory for tpu_custom_call.1']
    #allocation5 [shape = 'u8[4096]{0}', space=vmem, size = 0x1000, scoped, tag = 'output window, operand 0, single buffered']
    %10 = vsyncpa [#allocation3], 0
    %11 = vsyncpa [#allocation4], 0
    // Predicated region
    $region2: #{tpu_custom_call.1} parent=1 // pred_check
      _
    $region3: #{tpu_custom_call.1} parent=1 // pred_check_branch
      %13 = sbr.rel (0) target = $region5
    $region4: #{tpu_custom_call.1} parent=1 // pred_region
      %s15 = ssub.s32 128, 128
      %16 = vsyncadd [#allocation3], %s15
      %s18 = sshll.u32 [#allocation2], 4
      %s19 = int_to_ptr.vmem [resolvable:$true] %s18
      %21 = dma.hbm_to_vmem [thread:$0]  %s0, 128, %s19, [#allocation3]
    $region5: #{tpu_custom_call.1} parent=1 // pred_fallthru
      _
    // Predicated region
    $region6: #{tpu_custom_call.1} parent=1 // pred_check
      _
    $region7: #{tpu_custom_call.1} parent=1 // pred_check_branch
      %23 = sbr.rel (0) target = $region9
    $region8: #{tpu_custom_call.1} parent=1 // pred_region
      _
    $region9: #{tpu_custom_call.1} parent=1 // pred_fallthru
      _
    // Predicated region
    $region10: #{tpu_custom_call.1} parent=1 // pred_check
      _
    $region11: #{tpu_custom_call.1} parent=1 // pred_check_branch
      %25 = sbr.rel (0) target = $region13
    $region12: #{tpu_custom_call.1} parent=1 // pred_region
      _
    $region13: #{tpu_custom_call.1} parent=1 // pred_fallthru
      _
    // Predicated region
    $region14: #{tpu_custom_call.1} parent=1 // pred_check
      _
    $region15: #{tpu_custom_call.1} parent=1 // pred_check_branch
      %27 = sbr.rel (0) target = $region17
    $region16: #{tpu_custom_call.1} parent=1 // pred_region
      _
    $region17: #{tpu_custom_call.1} parent=1 // pred_fallthru
      _
    // Predicated region
    $region18: #{tpu_custom_call.1} parent=1 // pred_check
      _
    $region19: #{tpu_custom_call.1} parent=1 // pred_check_branch
      %29 = sbr.rel (0) target = $region21
    $region20: #{tpu_custom_call.1} parent=1 // pred_region
      _
    $region21: #{tpu_custom_call.1} parent=1 // pred_fallthru
      _
    // Predicated region
    $region22: #{tpu_custom_call.1} parent=1 // pred_check
      _
    $region23: #{tpu_custom_call.1} parent=1 // pred_check_branch
      %31 = sbr.rel (0) target = $region25
    $region24: #{tpu_custom_call.1} parent=1 // pred_region
      %32 = dma.done [#allocation3], 128
    $region25: #{tpu_custom_call.1} parent=1 // pred_fallthru
      _
    %v34 = vld [vmem:[#allocation2] sm:$0xff]
    %v35 = vld [vmem:[%s1] sm:$0xff]
    %v36 = vadd.f32 %v34, %v35
    %v37 = vld [vmem:[%s1 + $0x8] sm:$0x1]
    %v38 = vld [vmem:[%s1 + $0x9] sm:$0x1]
    %vm39 = vcmask 261120
    %v40 = vsel %vm39, %v36, 0.0
    %41 = vadd.xlane.f32.xlu0 %v40
    %v42 = vpop.xlane.xlu0 %41
    %v43 = vrcp.pop 32.0
    %v44 = vmul.f32 %v42, %v43
    %v45 = vmul.f32 %v36, %v36
    %v46 = vsel %vm39, %v45, 0.0
    %47 = vadd.xlane.f32.xlu0 %v46
    %v48 = vpop.xlane.xlu0 %47
    %v49 = vmul.f32 %v48, %v43
    %v50 = vmul.f32 %v44, %v44
    %v51 = vsub.f32 %v49, %v50
    %v52 = vmax.f32 %v51, 0.0
    %v53 = vsub.f32 %v36, %v44
    %v54 = vadd.f32 %v52, 1e-12
    %v55 = vrsqrt.pop %v54
    %v56 = vmul.f32 %v53, %v55
    %v57 = vlaneseq
    %v58 = vshrl.u32 %v57, 7
    %v59 = vsub.s32 0, %v58
    %v60 = vrot.slane %v37, %v59
    %v61 = vmul.f32 %v56, %v60
    %v62 = vlaneseq
    %v63 = vshrl.u32 %v62, 7
    %v64 = vsub.s32 0, %v63
    %v65 = vrot.slane %v38, %v64
    %v66 = vadd.f32 %v61, %v65
    %v67 = vpack.c.bf16 %v66, %v66
    %v68 = vld [vmem:[%s2] sm:$0xf]
    %v69 = vld [vmem:[%s2 + $0x8] sm:$0xf]
    %v70 = vld [vmem:[%s2 + $0x10] sm:$0xf]
    %v71 = vld [vmem:[%s2 + $0x18] sm:$0xf]
    %v72 = vld [vmem:[%s4] sm:$0x1]
    %v73 = vlaneseq
    %v74 = vshrl.u32 %v73, 7
    %v75 = vsub.s32 0, %v74
    %v76 = vrot.slane %v72, %v75
    %v81 = vunpack.c.l.b16 %v68
    %v82 = vunpack.c.l.b16 %v69
    %v83 = vunpack.c.l.b16 %v70
    %v84 = vunpack.c.l.b16 %v71
    %v85 = vpack.c.b16 %v82, %v81
    %v86 = vpack.c.b16 %v84, %v83
    %v90 = vsel %vm39, %v67, 0
    %92 = vmatprep.subr.bf16.mxu0 0
    %93 = vmatpush1.bf16.msra.mxu0 %v85
    %94 = vmatprep.subr.bf16.mxu0 0
    %95 = vmatpush1.bf16.msra.mxu0 %v86
    %96 = vmatprep.subr.bf16.mxu0 0
    %97 = vmatpush1.bf16.msra.mxu0 0
    %98 = vmatprep.subr.bf16.mxu0 0
    %99 = vmatpush1.bf16.msra.mxu0 0
    %100 = vmatprep.subr.bf16.mxu0 0
    %101 = vmatpush1.bf16.msra.mxu0 0
    %102 = vmatprep.subr.bf16.mxu0 0
    %103 = vmatpush1.bf16.msra.mxu0 0
    %104 = vmatprep.subr.bf16.mxu0 0
    %105 = vmatpush1.bf16.msra.mxu0 0
    %106 = vmatprep.subr.bf16.mxu0 0
    %107 = vmatpush1.bf16.msra.mxu0 0
    %108 = vmatprep.subr.bf16.mxu0 0
    %109 = vmatpush1.bf16.msra.mxu0 0
    %110 = vmatprep.subr.bf16.mxu0 0
    %111 = vmatpush1.bf16.msra.mxu0 0
    %112 = vmatprep.subr.bf16.mxu0 0
    %113 = vmatpush1.bf16.msra.mxu0 0
    %114 = vmatprep.subr.bf16.mxu0 0
    %115 = vmatpush1.bf16.msra.mxu0 0
    %116 = vmatprep.subr.bf16.mxu0 0
    %117 = vmatpush1.bf16.msra.mxu0 0
    %118 = vmatprep.subr.bf16.mxu0 0
    %119 = vmatpush1.bf16.msra.mxu0 0
    %120 = vmatprep.subr.bf16.mxu0 0
    %121 = vmatpush1.bf16.msra.mxu0 0
    %122 = vmatprep.subr.bf16.mxu0 0
    %123 = vmatpush1.bf16.msra.mxu0 0
    %124 = vmatprep.mubr.bf16.mxu0 0
    %125 = vmatmul.mubr.bf16.gmra.mrb[0].mxu0 %v90
    %v126 = vpop.f32.mrb[0].mxu0
    %v127 = vadd.f32 %v76, %v126
    %v128 = vpop.f32.mrb[0].mxu0
    %v129 = vpop.f32.mrb[0].mxu0
    %v130 = vpop.f32.mrb[0].mxu0
    %131 = vdwg.mxu0
    %132 = vrot.lane.b32.xlu0 %v85, 96
    %v133 = vpop.permute.xlu0 %132
    %134 = vrot.lane.b32.xlu0 %v86, 96
    %v135 = vpop.permute.xlu0 %134
    %139 = vrot.lane.b32.xlu0 %v76, 96
    %v140 = vpop.permute.xlu0 %139
    %142 = vmatprep.subr.bf16.mxu0 0
    %143 = vmatpush1.bf16.msra.mxu0 %v133
    %144 = vmatprep.subr.bf16.mxu0 0
    %145 = vmatpush1.bf16.msra.mxu0 %v135
    %146 = vmatprep.subr.bf16.mxu0 0
    %147 = vmatpush1.bf16.msra.mxu0 0
    %148 = vmatprep.subr.bf16.mxu0 0
    %149 = vmatpush1.bf16.msra.mxu0 0
    %150 = vmatprep.subr.bf16.mxu0 0
    %151 = vmatpush1.bf16.msra.mxu0 0
    %152 = vmatprep.subr.bf16.mxu0 0
    %153 = vmatpush1.bf16.msra.mxu0 0
    %154 = vmatprep.subr.bf16.mxu0 0
    %155 = vmatpush1.bf16.msra.mxu0 0
    %156 = vmatprep.subr.bf16.mxu0 0
    %157 = vmatpush1.bf16.msra.mxu0 0
    %158 = vmatprep.subr.bf16.mxu0 0
    %159 = vmatpush1.bf16.msra.mxu0 0
    %160 = vmatprep.subr.bf16.mxu0 0
    %161 = vmatpush1.bf16.msra.mxu0 0
    %162 = vmatprep.subr.bf16.mxu0 0
    %163 = vmatpush1.bf16.msra.mxu0 0
    %164 = vmatprep.subr.bf16.mxu0 0
    %165 = vmatpush1.bf16.msra.mxu0 0
    %166 = vmatprep.subr.bf16.mxu0 0
    %167 = vmatpush1.bf16.msra.mxu0 0
    %168 = vmatprep.subr.bf16.mxu0 0
    %169 = vmatpush1.bf16.msra.mxu0 0
    %170 = vmatprep.subr.bf16.mxu0 0
    %171 = vmatpush1.bf16.msra.mxu0 0
    %172 = vmatprep.subr.bf16.mxu0 0
    %173 = vmatpush1.bf16.msra.mxu0 0
    %174 = vmatprep.mubr.bf16.mxu0 0
    %175 = vmatmul.mubr.bf16.gmra.mrb[0].mxu0 %v90
    %v176 = vpop.f32.mrb[0].mxu0
    %v177 = vadd.f32 %v140, %v176
    %v178 = vpop.f32.mrb[0].mxu0
    %v179 = vpop.f32.mrb[0].mxu0
    %v180 = vpop.f32.mrb[0].mxu0
    %181 = vdwg.mxu0
    %182 = vrot.lane.b32.xlu0 %v85, 64
    %v183 = vpop.permute.xlu0 %182
    %184 = vrot.lane.b32.xlu0 %v86, 64
    %v185 = vpop.permute.xlu0 %184
    %188 = vrot.lane.b32.xlu0 %v76, 64
    %v189 = vpop.permute.xlu0 %188
    %191 = vmatprep.subr.bf16.mxu0 0
    %192 = vmatpush1.bf16.msra.mxu0 %v183
    %193 = vmatprep.subr.bf16.mxu0 0
    %194 = vmatpush1.bf16.msra.mxu0 %v185
    %195 = vmatprep.subr.bf16.mxu0 0
    %196 = vmatpush1.bf16.msra.mxu0 0
    %197 = vmatprep.subr.bf16.mxu0 0
    %198 = vmatpush1.bf16.msra.mxu0 0
    %199 = vmatprep.subr.bf16.mxu0 0
    %200 = vmatpush1.bf16.msra.mxu0 0
    %201 = vmatprep.subr.bf16.mxu0 0
    %202 = vmatpush1.bf16.msra.mxu0 0
    %203 = vmatprep.subr.bf16.mxu0 0
    %204 = vmatpush1.bf16.msra.mxu0 0
    %205 = vmatprep.subr.bf16.mxu0 0
    %206 = vmatpush1.bf16.msra.mxu0 0
    %207 = vmatprep.subr.bf16.mxu0 0
    %208 = vmatpush1.bf16.msra.mxu0 0
    %209 = vmatprep.subr.bf16.mxu0 0
    %210 = vmatpush1.bf16.msra.mxu0 0
    %211 = vmatprep.subr.bf16.mxu0 0
    %212 = vmatpush1.bf16.msra.mxu0 0
    %213 = vmatprep.subr.bf16.mxu0 0
    %214 = vmatpush1.bf16.msra.mxu0 0
    %215 = vmatprep.subr.bf16.mxu0 0
    %216 = vmatpush1.bf16.msra.mxu0 0
    %217 = vmatprep.subr.bf16.mxu0 0
    %218 = vmatpush1.bf16.msra.mxu0 0
    %219 = vmatprep.subr.bf16.mxu0 0
    %220 = vmatpush1.bf16.msra.mxu0 0
    %221 = vmatprep.subr.bf16.mxu0 0
    %222 = vmatpush1.bf16.msra.mxu0 0
    %223 = vmatprep.mubr.bf16.mxu0 0
    %224 = vmatmul.mubr.bf16.gmra.mrb[0].mxu0 %v90
    %v225 = vpop.f32.mrb[0].mxu0
    %v226 = vadd.f32 %v189, %v225
    %v227 = vpop.f32.mrb[0].mxu0
    %v228 = vpop.f32.mrb[0].mxu0
    %v229 = vpop.f32.mrb[0].mxu0
    %230 = vdwg.mxu0
    %v231 = vpack.c.bf16 %v127, %v127
    %v232 = vpack.c.bf16 %v177, %v177
    %vm233 = vcmask 130048
    %v235 = vsel %vm233, %v231, 0
    %v238 = vsel %vm233, %v232, 0
    %240 = vmatprep.subr.bf16.mxu0 0
    %241 = vmatpush1.bf16.xpose.msra.mxu0 %v238
    %242 = vmatprep.subr.bf16.mxu0 0
    %243 = vmatpush1.bf16.xpose.msra.mxu0 0
    %244 = vmatprep.subr.bf16.mxu0 0
    %245 = vmatpush1.bf16.xpose.msra.mxu0 0
    %246 = vmatprep.subr.bf16.mxu0 0
    %247 = vmatpush1.bf16.xpose.msra.mxu0 0
    %248 = vmatprep.subr.bf16.mxu0 0
    %249 = vmatpush1.bf16.xpose.msra.mxu0 0
    %250 = vmatprep.subr.bf16.mxu0 0
    %251 = vmatpush1.bf16.xpose.msra.mxu0 0
    %252 = vmatprep.subr.bf16.mxu0 0
    %253 = vmatpush1.bf16.xpose.msra.mxu0 0
    %254 = vmatprep.subr.bf16.mxu0 0
    %255 = vmatpush1.bf16.xpose.msra.mxu0 0
    %256 = vmatprep.subr.bf16.mxu0 0
    %257 = vmatpush1.bf16.xpose.msra.mxu0 0
    %258 = vmatprep.subr.bf16.mxu0 0
    %259 = vmatpush1.bf16.xpose.msra.mxu0 0
    %260 = vmatprep.subr.bf16.mxu0 0
    %261 = vmatpush1.bf16.xpose.msra.mxu0 0
    %262 = vmatprep.subr.bf16.mxu0 0
    %263 = vmatpush1.bf16.xpose.msra.mxu0 0
    %264 = vmatprep.subr.bf16.mxu0 0
    %265 = vmatpush1.bf16.xpose.msra.mxu0 0
    %266 = vmatprep.subr.bf16.mxu0 0
    %267 = vmatpush1.bf16.xpose.msra.mxu0 0
    %268 = vmatprep.subr.bf16.mxu0 0
    %269 = vmatpush1.bf16.xpose.msra.mxu0 0
    %270 = vmatprep.subr.bf16.mxu0 0
    %271 = vmatpush1.bf16.xpose.msra.mxu0 0
    %272 = vmatprep.mubr.bf16.mxu0 0
    %273 = vmatmul.mubr.bf16.gmra.mrb[0].mxu0 %v235
    %v274 = vpop.f32.mrb[0].mxu0
    %v275 = vadd.f32 0.0, %v274
    %v276 = vpop.f32.mrb[0].mxu0
    %v277 = vpop.f32.mrb[0].mxu0
    %v278 = vpop.f32.mrb[0].mxu0
    %279 = vdwg.mxu0
    %v280 = vmul.f32 %v275, 0.25
    %vm281 = vcmask 64512
    %v282 = vsel %vm281, %v280, -inf
    %283 = vmax.xlane.f32.xlu0 %v282
    %v284 = vpop.xlane.xlu0 %283
    %v285 = vsub.f32 %v280, %v284
    %v286 = vmul.f32 %v285, 1.442695
    %v287 = vpow.pop %v286
    %v288 = vsel %vm281, %v287, 0.0
    %289 = vadd.xlane.f32.xlu0 %v288
    %v290 = vpop.xlane.xlu0 %289
    %v291 = vrcp.pop %v290
    %v292 = vmul.f32 %v287, %v291
    %v293 = vpack.c.bf16 %v292, %v292
    %v294 = vpack.c.bf16 %v226, %v226
    %v296 = vsel %vm281, %v293, 0
    %vm298 = vcmask 1043456
    %v300 = vsel %vm298, %v294, 0
    %302 = vmatprep.subr.bf16.mxu0 0
    %303 = vmatpush1.bf16.msra.mxu0 %v300
    %304 = vmatprep.subr.bf16.mxu0 0
    %305 = vmatpush1.bf16.msra.mxu0 0
    %306 = vmatprep.subr.bf16.mxu0 0
    %307 = vmatpush1.bf16.msra.mxu0 0
    %308 = vmatprep.subr.bf16.mxu0 0
    %309 = vmatpush1.bf16.msra.mxu0 0
    %310 = vmatprep.subr.bf16.mxu0 0
    %311 = vmatpush1.bf16.msra.mxu0 0
    %312 = vmatprep.subr.bf16.mxu0 0
    %313 = vmatpush1.bf16.msra.mxu0 0
    %314 = vmatprep.subr.bf16.mxu0 0
    %315 = vmatpush1.bf16.msra.mxu0 0
    %316 = vmatprep.subr.bf16.mxu0 0
    %317 = vmatpush1.bf16.msra.mxu0 0
    %318 = vmatprep.subr.bf16.mxu0 0
    %319 = vmatpush1.bf16.msra.mxu0 0
    %320 = vmatprep.subr.bf16.mxu0 0
    %321 = vmatpush1.bf16.msra.mxu0 0
    %322 = vmatprep.subr.bf16.mxu0 0
    %323 = vmatpush1.bf16.msra.mxu0 0
    %324 = vmatprep.subr.bf16.mxu0 0
    %325 = vmatpush1.bf16.msra.mxu0 0
    %326 = vmatprep.subr.bf16.mxu0 0
    %327 = vmatpush1.bf16.msra.mxu0 0
    %328 = vmatprep.subr.bf16.mxu0 0
    %329 = vmatpush1.bf16.msra.mxu0 0
    %330 = vmatprep.subr.bf16.mxu0 0
    %331 = vmatpush1.bf16.msra.mxu0 0
    %332 = vmatprep.subr.bf16.mxu0 0
    %333 = vmatpush1.bf16.msra.mxu0 0
    %334 = vmatprep.mubr.bf16.mxu0 0
    %335 = vmatmul.mubr.bf16.gmra.mrb[0].mxu0 %v296
    %v336 = vpop.f32.mrb[0].mxu0
    %v337 = vadd.f32 0.0, %v336
    %v338 = vpop.f32.mrb[0].mxu0
    %v339 = vpop.f32.mrb[0].mxu0
    %v340 = vpop.f32.mrb[0].mxu0
    %341 = vdwg.mxu0
    %v342 = vpack.c.bf16 %v337, %v337
    %v343 = vld [vmem:[%s2] sm:$0xf]
    %v344 = vld [vmem:[%s2 + $0x8] sm:$0xf]
    %345 = vrot.lane.b32.xlu0 %v85, 112
    %v346 = vpop.permute.xlu0 %345
    %347 = vrot.lane.b32.xlu0 %v86, 112
    %v348 = vpop.permute.xlu0 %347
    %351 = vrot.lane.b32.xlu0 %v76, 112
    %v352 = vpop.permute.xlu0 %351
    %354 = vmatprep.subr.bf16.mxu0 0
    %355 = vmatpush1.bf16.msra.mxu0 %v346
    %356 = vmatprep.subr.bf16.mxu0 0
    %357 = vmatpush1.bf16.msra.mxu0 %v348
    %358 = vmatprep.subr.bf16.mxu0 0
    %359 = vmatpush1.bf16.msra.mxu0 0
    %360 = vmatprep.subr.bf16.mxu0 0
    %361 = vmatpush1.bf16.msra.mxu0 0
    %362 = vmatprep.subr.bf16.mxu0 0
    %363 = vmatpush1.bf16.msra.mxu0 0
    %364 = vmatprep.subr.bf16.mxu0 0
    %365 = vmatpush1.bf16.msra.mxu0 0
    %366 = vmatprep.subr.bf16.mxu0 0
    %367 = vmatpush1.bf16.msra.mxu0 0
    %368 = vmatprep.subr.bf16.mxu0 0
    %369 = vmatpush1.bf16.msra.mxu0 0
    %370 = vmatprep.subr.bf16.mxu0 0
    %371 = vmatpush1.bf16.msra.mxu0 0
    %372 = vmatprep.subr.bf16.mxu0 0
    %373 = vmatpush1.bf16.msra.mxu0 0
    %374 = vmatprep.subr.bf16.mxu0 0
    %375 = vmatpush1.bf16.msra.mxu0 0
    %376 = vmatprep.subr.bf16.mxu0 0
    %377 = vmatpush1.bf16.msra.mxu0 0
    %378 = vmatprep.subr.bf16.mxu0 0
    %379 = vmatpush1.bf16.msra.mxu0 0
    %380 = vmatprep.subr.bf16.mxu0 0
    %381 = vmatpush1.bf16.msra.mxu0 0
    %382 = vmatprep.subr.bf16.mxu0 0
    %383 = vmatpush1.bf16.msra.mxu0 0
    %384 = vmatprep.subr.bf16.mxu0 0
    %385 = vmatpush1.bf16.msra.mxu0 0
    %386 = vmatprep.mubr.bf16.mxu0 0
    %387 = vmatmul.mubr.bf16.gmra.mrb[0].mxu0 %v90
    %v388 = vpop.f32.mrb[0].mxu0
    %v389 = vadd.f32 %v352, %v388
    %v390 = vpop.f32.mrb[0].mxu0
    %v391 = vpop.f32.mrb[0].mxu0
    %v392 = vpop.f32.mrb[0].mxu0
    %393 = vdwg.mxu0
    %394 = vrot.lane.b32.xlu0 %v85, 80
    %v395 = vpop.permute.xlu0 %394
    %396 = vrot.lane.b32.xlu0 %v86, 80
    %v397 = vpop.permute.xlu0 %396
    %400 = vrot.lane.b32.xlu0 %v76, 80
    %v401 = vpop.permute.xlu0 %400
    %403 = vmatprep.subr.bf16.mxu0 0
    %404 = vmatpush1.bf16.msra.mxu0 %v395
    %405 = vmatprep.subr.bf16.mxu0 0
    %406 = vmatpush1.bf16.msra.mxu0 %v397
    %407 = vmatprep.subr.bf16.mxu0 0
    %408 = vmatpush1.bf16.msra.mxu0 0
    %409 = vmatprep.subr.bf16.mxu0 0
    %410 = vmatpush1.bf16.msra.mxu0 0
    %411 = vmatprep.subr.bf16.mxu0 0
    %412 = vmatpush1.bf16.msra.mxu0 0
    %413 = vmatprep.subr.bf16.mxu0 0
    %414 = vmatpush1.bf16.msra.mxu0 0
    %415 = vmatprep.subr.bf16.mxu0 0
    %416 = vmatpush1.bf16.msra.mxu0 0
    %417 = vmatprep.subr.bf16.mxu0 0
    %418 = vmatpush1.bf16.msra.mxu0 0
    %419 = vmatprep.subr.bf16.mxu0 0
    %420 = vmatpush1.bf16.msra.mxu0 0
    %421 = vmatprep.subr.bf16.mxu0 0
    %422 = vmatpush1.bf16.msra.mxu0 0
    %423 = vmatprep.subr.bf16.mxu0 0
    %424 = vmatpush1.bf16.msra.mxu0 0
    %425 = vmatprep.subr.bf16.mxu0 0
    %426 = vmatpush1.bf16.msra.mxu0 0
    %427 = vmatprep.subr.bf16.mxu0 0
    %428 = vmatpush1.bf16.msra.mxu0 0
    %429 = vmatprep.subr.bf16.mxu0 0
    %430 = vmatpush1.bf16.msra.mxu0 0
    %431 = vmatprep.subr.bf16.mxu0 0
    %432 = vmatpush1.bf16.msra.mxu0 0
    %433 = vmatprep.subr.bf16.mxu0 0
    %434 = vmatpush1.bf16.msra.mxu0 0
    %435 = vmatprep.mubr.bf16.mxu0 0
    %436 = vmatmul.mubr.bf16.gmra.mrb[0].mxu0 %v90
    %v437 = vpop.f32.mrb[0].mxu0
    %v438 = vadd.f32 %v401, %v437
    %v439 = vpop.f32.mrb[0].mxu0
    %v440 = vpop.f32.mrb[0].mxu0
    %v441 = vpop.f32.mrb[0].mxu0
    %442 = vdwg.mxu0
    %443 = vrot.lane.b32.xlu0 %v85, 48
    %v444 = vpop.permute.xlu0 %443
    %445 = vrot.lane.b32.xlu0 %v86, 48
    %v446 = vpop.permute.xlu0 %445
    %449 = vrot.lane.b32.xlu0 %v76, 48
    %v450 = vpop.permute.xlu0 %449
    %452 = vmatprep.subr.bf16.mxu0 0
    %453 = vmatpush1.bf16.msra.mxu0 %v444
    %454 = vmatprep.subr.bf16.mxu0 0
    %455 = vmatpush1.bf16.msra.mxu0 %v446
    %456 = vmatprep.subr.bf16.mxu0 0
    %457 = vmatpush1.bf16.msra.mxu0 0
    %458 = vmatprep.subr.bf16.mxu0 0
    %459 = vmatpush1.bf16.msra.mxu0 0
    %460 = vmatprep.subr.bf16.mxu0 0
    %461 = vmatpush1.bf16.msra.mxu0 0
    %462 = vmatprep.subr.bf16.mxu0 0
    %463 = vmatpush1.bf16.msra.mxu0 0
    %464 = vmatprep.subr.bf16.mxu0 0
    %465 = vmatpush1.bf16.msra.mxu0 0
    %466 = vmatprep.subr.bf16.mxu0 0
    %467 = vmatpush1.bf16.msra.mxu0 0
    %468 = vmatprep.subr.bf16.mxu0 0
    %469 = vmatpush1.bf16.msra.mxu0 0
    %470 = vmatprep.subr.bf16.mxu0 0
    %471 = vmatpush1.bf16.msra.mxu0 0
    %472 = vmatprep.subr.bf16.mxu0 0
    %473 = vmatpush1.bf16.msra.mxu0 0
    %474 = vmatprep.subr.bf16.mxu0 0
    %475 = vmatpush1.bf16.msra.mxu0 0
    %476 = vmatprep.subr.bf16.mxu0 0
    %477 = vmatpush1.bf16.msra.mxu0 0
    %478 = vmatprep.subr.bf16.mxu0 0
    %479 = vmatpush1.bf16.msra.mxu0 0
    %480 = vmatprep.subr.bf16.mxu0 0
    %481 = vmatpush1.bf16.msra.mxu0 0
    %482 = vmatprep.subr.bf16.mxu0 0
    %483 = vmatpush1.bf16.msra.mxu0 0
    %484 = vmatprep.mubr.bf16.mxu0 0
    %485 = vmatmul.mubr.bf16.gmra.mrb[0].mxu0 %v90
    %v486 = vpop.f32.mrb[0].mxu0
    %v487 = vadd.f32 %v450, %v486
    %v488 = vpop.f32.mrb[0].mxu0
    %v489 = vpop.f32.mrb[0].mxu0
    %v490 = vpop.f32.mrb[0].mxu0
    %491 = vdwg.mxu0
    %v492 = vpack.c.bf16 %v389, %v389
    %v493 = vpack.c.bf16 %v438, %v438
    %v495 = vsel %vm233, %v492, 0
    %v498 = vsel %vm233, %v493, 0
    %500 = vmatprep.subr.bf16.mxu0 0
    %501 = vmatpush1.bf16.xpose.msra.mxu0 %v498
    %502 = vmatprep.subr.bf16.mxu0 0
    %503 = vmatpush1.bf16.xpose.msra.mxu0 0
    %504 = vmatprep.subr.bf16.mxu0 0
    %505 = vmatpush1.bf16.xpose.msra.mxu0 0
    %506 = vmatprep.subr.bf16.mxu0 0
    %507 = vmatpush1.bf16.xpose.msra.mxu0 0
    %508 = vmatprep.subr.bf16.mxu0 0
    %509 = vmatpush1.bf16.xpose.msra.mxu0 0
    %510 = vmatprep.subr.bf16.mxu0 0
    %511 = vmatpush1.bf16.xpose.msra.mxu0 0
    %512 = vmatprep.subr.bf16.mxu0 0
    %513 = vmatpush1.bf16.xpose.msra.mxu0 0
    %514 = vmatprep.subr.bf16.mxu0 0
    %515 = vmatpush1.bf16.xpose.msra.mxu0 0
    %516 = vmatprep.subr.bf16.mxu0 0
    %517 = vmatpush1.bf16.xpose.msra.mxu0 0
    %518 = vmatprep.subr.bf16.mxu0 0
    %519 = vmatpush1.bf16.xpose.msra.mxu0 0
    %520 = vmatprep.subr.bf16.mxu0 0
    %521 = vmatpush1.bf16.xpose.msra.mxu0 0
    %522 = vmatprep.subr.bf16.mxu0 0
    %523 = vmatpush1.bf16.xpose.msra.mxu0 0
    %524 = vmatprep.subr.bf16.mxu0 0
    %525 = vmatpush1.bf16.xpose.msra.mxu0 0
    %526 = vmatprep.subr.bf16.mxu0 0
    %527 = vmatpush1.bf16.xpose.msra.mxu0 0
    %528 = vmatprep.subr.bf16.mxu0 0
    %529 = vmatpush1.bf16.xpose.msra.mxu0 0
    %530 = vmatprep.subr.bf16.mxu0 0
    %531 = vmatpush1.bf16.xpose.msra.mxu0 0
    %532 = vmatprep.mubr.bf16.mxu0 0
    %533 = vmatmul.mubr.bf16.gmra.mrb[0].mxu0 %v495
    %v534 = vpop.f32.mrb[0].mxu0
    %v535 = vadd.f32 0.0, %v534
    %v536 = vpop.f32.mrb[0].mxu0
    %v537 = vpop.f32.mrb[0].mxu0
    %v538 = vpop.f32.mrb[0].mxu0
    %539 = vdwg.mxu0
    %v540 = vmul.f32 %v535, 0.25
    %v541 = vsel %vm281, %v540, -inf
    %542 = vmax.xlane.f32.xlu0 %v541
    %v543 = vpop.xlane.xlu0 %542
    %v544 = vsub.f32 %v540, %v543
    %v545 = vmul.f32 %v544, 1.442695
    %v546 = vpow.pop %v545
    %v547 = vsel %vm281, %v546, 0.0
    %548 = vadd.xlane.f32.xlu0 %v547
    %v549 = vpop.xlane.xlu0 %548
    %v550 = vrcp.pop %v549
    %v551 = vmul.f32 %v546, %v550
    %v552 = vpack.c.bf16 %v551, %v551
    %v553 = vpack.c.bf16 %v487, %v487
    %v555 = vsel %vm281, %v552, 0
    %v558 = vsel %vm298, %v553, 0
    %560 = vmatprep.subr.bf16.mxu0 0
    %561 = vmatpush1.bf16.msra.mxu0 %v558
    %562 = vmatprep.subr.bf16.mxu0 0
    %563 = vmatpush1.bf16.msra.mxu0 0
    %564 = vmatprep.subr.bf16.mxu0 0
    %565 = vmatpush1.bf16.msra.mxu0 0
    %566 = vmatprep.subr.bf16.mxu0 0
    %567 = vmatpush1.bf16.msra.mxu0 0
    %568 = vmatprep.subr.bf16.mxu0 0
    %569 = vmatpush1.bf16.msra.mxu0 0
    %570 = vmatprep.subr.bf16.mxu0 0
    %571 = vmatpush1.bf16.msra.mxu0 0
    %572 = vmatprep.subr.bf16.mxu0 0
    %573 = vmatpush1.bf16.msra.mxu0 0
    %574 = vmatprep.subr.bf16.mxu0 0
    %575 = vmatpush1.bf16.msra.mxu0 0
    %576 = vmatprep.subr.bf16.mxu0 0
    %577 = vmatpush1.bf16.msra.mxu0 0
    %578 = vmatprep.subr.bf16.mxu0 0
    %579 = vmatpush1.bf16.msra.mxu0 0
    %580 = vmatprep.subr.bf16.mxu0 0
    %581 = vmatpush1.bf16.msra.mxu0 0
    %582 = vmatprep.subr.bf16.mxu0 0
    %583 = vmatpush1.bf16.msra.mxu0 0
    %584 = vmatprep.subr.bf16.mxu0 0
    %585 = vmatpush1.bf16.msra.mxu0 0
    %586 = vmatprep.subr.bf16.mxu0 0
    %587 = vmatpush1.bf16.msra.mxu0 0
    %588 = vmatprep.subr.bf16.mxu0 0
    %589 = vmatpush1.bf16.msra.mxu0 0
    %590 = vmatprep.subr.bf16.mxu0 0
    %591 = vmatpush1.bf16.msra.mxu0 0
    %592 = vmatprep.mubr.bf16.mxu0 0
    %593 = vmatmul.mubr.bf16.gmra.mrb[0].mxu0 %v555
    %v594 = vpop.f32.mrb[0].mxu0
    %v595 = vadd.f32 0.0, %v594
    %v596 = vpop.f32.mrb[0].mxu0
    %v597 = vpop.f32.mrb[0].mxu0
    %v598 = vpop.f32.mrb[0].mxu0
    %599 = vdwg.mxu0
    %v600 = vpack.c.bf16 %v595, %v595
    %601 = vrot.lane.b32.xlu0 %v86, 32
    %v602 = vpop.permute.xlu0 %601
    %v605 = vsel %vm233, %v600, 0
    %607 = vmatprep.subr.bf16.mxu0 0
    %608 = vmatpush1.bf16.msra.mxu0 %v602
    %609 = vmatprep.subr.bf16.mxu0 0
    %610 = vmatpush1.bf16.msra.mxu0 0
    %611 = vmatprep.subr.bf16.mxu0 0
    %612 = vmatpush1.bf16.msra.mxu0 0
    %613 = vmatprep.subr.bf16.mxu0 0
    %614 = vmatpush1.bf16.msra.mxu0 0
    %615 = vmatprep.subr.bf16.mxu0 0
    %616 = vmatpush1.bf16.msra.mxu0 0
    %617 = vmatprep.subr.bf16.mxu0 0
    %618 = vmatpush1.bf16.msra.mxu0 0
    %619 = vmatprep.subr.bf16.mxu0 0
    %620 = vmatpush1.bf16.msra.mxu0 0
    %621 = vmatprep.subr.bf16.mxu0 0
    %622 = vmatpush1.bf16.msra.mxu0 0
    %623 = vmatprep.subr.bf16.mxu0 0
    %624 = vmatpush1.bf16.msra.mxu0 0
    %625 = vmatprep.subr.bf16.mxu0 0
    %626 = vmatpush1.bf16.msra.mxu0 0
    %627 = vmatprep.subr.bf16.mxu0 0
    %628 = vmatpush1.bf16.msra.mxu0 0
    %629 = vmatprep.subr.bf16.mxu0 0
    %630 = vmatpush1.bf16.msra.mxu0 0
    %631 = vmatprep.subr.bf16.mxu0 0
    %632 = vmatpush1.bf16.msra.mxu0 0
    %633 = vmatprep.subr.bf16.mxu0 0
    %634 = vmatpush1.bf16.msra.mxu0 0
    %635 = vmatprep.subr.bf16.mxu0 0
    %636 = vmatpush1.bf16.msra.mxu0 0
    %637 = vmatprep.subr.bf16.mxu0 0
    %638 = vmatpush1.bf16.msra.mxu0 0
    %639 = vmatprep.mubr.bf16.mxu0 0
    %640 = vmatmul.mubr.bf16.gmra.mrb[0].mxu0 %v605
    %v641 = vpop.f32.mrb[0].mxu0
    %v642 = vadd.f32 0.0, %v641
    %v643 = vpop.f32.mrb[0].mxu0
    %v644 = vpop.f32.mrb[0].mxu0
    %v645 = vpop.f32.mrb[0].mxu0
    %646 = vdwg.mxu0
    %v649 = vunpack.c.l.b16 %v343
    %v650 = vunpack.c.l.b16 %v344
    %v651 = vpack.c.b16 %v650, %v649
    %652 = vrot.lane.b32.xlu0 %v651, 32
    %v653 = vpop.permute.xlu0 %652
    %v656 = vsel %vm233, %v342, 0
    %658 = vmatprep.subr.bf16.mxu0 0
    %659 = vmatpush1.bf16.msra.mxu0 %v653
    %660 = vmatprep.subr.bf16.mxu0 0
    %661 = vmatpush1.bf16.msra.mxu0 0
    %662 = vmatprep.subr.bf16.mxu0 0
    %663 = vmatpush1.bf16.msra.mxu0 0
    %664 = vmatprep.subr.bf16.mxu0 0
    %665 = vmatpush1.bf16.msra.mxu0 0
    %666 = vmatprep.subr.bf16.mxu0 0
    %667 = vmatpush1.bf16.msra.mxu0 0
    %668 = vmatprep.subr.bf16.mxu0 0
    %669 = vmatpush1.bf16.msra.mxu0 0
    %670 = vmatprep.subr.bf16.mxu0 0
    %671 = vmatpush1.bf16.msra.mxu0 0
    %672 = vmatprep.subr.bf16.mxu0 0
    %673 = vmatpush1.bf16.msra.mxu0 0
    %674 = vmatprep.subr.bf16.mxu0 0
    %675 = vmatpush1.bf16.msra.mxu0 0
    %676 = vmatprep.subr.bf16.mxu0 0
    %677 = vmatpush1.bf16.msra.mxu0 0
    %678 = vmatprep.subr.bf16.mxu0 0
    %679 = vmatpush1.bf16.msra.mxu0 0
    %680 = vmatprep.subr.bf16.mxu0 0
    %681 = vmatpush1.bf16.msra.mxu0 0
    %682 = vmatprep.subr.bf16.mxu0 0
    %683 = vmatpush1.bf16.msra.mxu0 0
    %684 = vmatprep.subr.bf16.mxu0 0
    %685 = vmatpush1.bf16.msra.mxu0 0
    %686 = vmatprep.subr.bf16.mxu0 0
    %687 = vmatpush1.bf16.msra.mxu0 0
    %688 = vmatprep.subr.bf16.mxu0 0
    %689 = vmatpush1.bf16.msra.mxu0 0
    %690 = vmatprep.mubr.bf16.mxu0 0
    %691 = vmatmul.mubr.bf16.gmra.mrb[0].mxu0 %v656
    %v692 = vpop.f32.mrb[0].mxu0
    %v693 = vadd.f32 %v642, %v692
    %v694 = vpop.f32.mrb[0].mxu0
    %v695 = vpop.f32.mrb[0].mxu0
    %v696 = vpop.f32.mrb[0].mxu0
    %697 = vdwg.mxu0
    %v698 = vld [vmem:[%s4 + $0x2] sm:$0x1]
    %v699 = vlaneseq
    %v700 = vshrl.u32 %v699, 7
    %v701 = vsub.s32 0, %v700
    %v702 = vrot.slane %v698, %v701
    %v703 = vadd.f32 %v693, %v702
    %v704 = vadd.f32 %v703, %v66
    %v705 = vld [vmem:[%s4 + $0x4] sm:$0x1]
    %v706 = vld [vmem:[%s4 + $0x5] sm:$0x1]
    %v707 = vsel %vm39, %v704, 0.0
    %708 = vadd.xlane.f32.xlu0 %v707
    %v709 = vpop.xlane.xlu0 %708
    %v710 = vmul.f32 %v709, %v43
    %v711 = vmul.f32 %v704, %v704
    %v712 = vsel %vm39, %v711, 0.0
    %713 = vadd.xlane.f32.xlu0 %v712
    %v714 = vpop.xlane.xlu0 %713
    %v715 = vmul.f32 %v714, %v43
    %v716 = vmul.f32 %v710, %v710
    %v717 = vsub.f32 %v715, %v716
    %v718 = vmax.f32 %v717, 0.0
    %v719 = vsub.f32 %v704, %v710
    %v720 = vadd.f32 %v718, 1e-12
    %v721 = vrsqrt.pop %v720
    %v722 = vmul.f32 %v719, %v721
    %v723 = vlaneseq
    %v724 = vshrl.u32 %v723, 7
    %v725 = vsub.s32 0, %v724
    %v726 = vrot.slane %v705, %v725
    %v727 = vmul.f32 %v722, %v726
    %v728 = vlaneseq
    %v729 = vshrl.u32 %v728, 7
    %v730 = vsub.s32 0, %v729
    %v731 = vrot.slane %v706, %v730
    %v732 = vadd.f32 %v727, %v731
    %v733 = vpack.c.bf16 %v732, %v732
    %v734 = vld [vmem:[%s2 + $0x4] sm:$0xf]
    %v735 = vld [vmem:[%s2 + $0xc] sm:$0xf]
    %v736 = vld [vmem:[%s2 + $0x14] sm:$0xf]
    %v737 = vld [vmem:[%s2 + $0x1c] sm:$0xf]
    %v738 = vld [vmem:[%s4 + $0x1] sm:$0x1]
    %v739 = vlaneseq
    %v740 = vshrl.u32 %v739, 7
    %v741 = vsub.s32 0, %v740
    %v742 = vrot.slane %v738, %v741
    %v747 = vunpack.c.l.b16 %v734
    %v748 = vunpack.c.l.b16 %v735
    %v749 = vunpack.c.l.b16 %v736
    %v750 = vunpack.c.l.b16 %v737
    %v751 = vpack.c.b16 %v748, %v747
    %v752 = vpack.c.b16 %v750, %v749
    %v756 = vsel %vm39, %v733, 0
    %758 = vmatprep.subr.bf16.mxu0 0
    %759 = vmatpush1.bf16.msra.mxu0 %v751
    %760 = vmatprep.subr.bf16.mxu0 0
    %761 = vmatpush1.bf16.msra.mxu0 %v752
    %762 = vmatprep.subr.bf16.mxu0 0
    %763 = vmatpush1.bf16.msra.mxu0 0
    %764 = vmatprep.subr.bf16.mxu0 0
    %765 = vmatpush1.bf16.msra.mxu0 0
    %766 = vmatprep.subr.bf16.mxu0 0
    %767 = vmatpush1.bf16.msra.mxu0 0
    %768 = vmatprep.subr.bf16.mxu0 0
    %769 = vmatpush1.bf16.msra.mxu0 0
    %770 = vmatprep.subr.bf16.mxu0 0
    %771 = vmatpush1.bf16.msra.mxu0 0
    %772 = vmatprep.subr.bf16.mxu0 0
    %773 = vmatpush1.bf16.msra.mxu0 0
    %774 = vmatprep.subr.bf16.mxu0 0
    %775 = vmatpush1.bf16.msra.mxu0 0
    %776 = vmatprep.subr.bf16.mxu0 0
    %777 = vmatpush1.bf16.msra.mxu0 0
    %778 = vmatprep.subr.bf16.mxu0 0
    %779 = vmatpush1.bf16.msra.mxu0 0
    %780 = vmatprep.subr.bf16.mxu0 0
    %781 = vmatpush1.bf16.msra.mxu0 0
    %782 = vmatprep.subr.bf16.mxu0 0
    %783 = vmatpush1.bf16.msra.mxu0 0
    %784 = vmatprep.subr.bf16.mxu0 0
    %785 = vmatpush1.bf16.msra.mxu0 0
    %786 = vmatprep.subr.bf16.mxu0 0
    %787 = vmatpush1.bf16.msra.mxu0 0
    %788 = vmatprep.subr.bf16.mxu0 0
    %789 = vmatpush1.bf16.msra.mxu0 0
    %790 = vmatprep.mubr.bf16.mxu0 0
    %791 = vmatmul.mubr.bf16.gmra.mrb[0].mxu0 %v756
    %v792 = vpop.f32.mrb[0].mxu0
    %v793 = vadd.f32 %v742, %v792
    %v794 = vpop.f32.mrb[0].mxu0
    %v795 = vpop.f32.mrb[0].mxu0
    %v796 = vpop.f32.mrb[0].mxu0
    %797 = vdwg.mxu0
    %v798 = vmul.f32 %v793, 0.5
    %v799 = vmul.f32 %v793, 0.044715
    %v800 = vmul.f32 %v799, %v793
    %v801 = vmul.f32 %v800, %v793
    %v802 = vadd.f32 %v793, %v801
    %v803 = vmul.f32 %v802, 0.7978846
    %v804 = vtanh.pop %v803
    %v805 = vadd.f32 %v804, 1.0
    %v806 = vmul.f32 %v798, %v805
    %v807 = vpack.c.bf16 %v806, %v806
    %v808 = vld [vmem:[%s3] sm:$0xf]
    %v809 = vld [vmem:[%s3 + $0x4] sm:$0xf]
    %v810 = vld [vmem:[%s3 + $0x8] sm:$0xf]
    %v811 = vld [vmem:[%s3 + $0xc] sm:$0xf]
    %v812 = vld [vmem:[%s3 + $0x10] sm:$0xf]
    %v813 = vld [vmem:[%s3 + $0x14] sm:$0xf]
    %v814 = vld [vmem:[%s3 + $0x18] sm:$0xf]
    %v815 = vld [vmem:[%s3 + $0x1c] sm:$0xf]
    %v816 = vld [vmem:[%s4 + $0x3] sm:$0x1]
    %v817 = vlaneseq
    %v818 = vshrl.u32 %v817, 7
    %v819 = vsub.s32 0, %v818
    %v820 = vrot.slane %v816, %v819
    %v829 = vunpack.c.l.b16 %v808
    %v830 = vunpack.c.l.b16 %v809
    %v831 = vunpack.c.l.b16 %v810
    %v832 = vunpack.c.l.b16 %v811
    %v833 = vunpack.c.l.b16 %v812
    %v834 = vunpack.c.l.b16 %v813
    %v835 = vunpack.c.l.b16 %v814
    %v836 = vunpack.c.l.b16 %v815
    %v837 = vpack.c.b16 %v830, %v829
    %v838 = vpack.c.b16 %v832, %v831
    %v839 = vpack.c.b16 %v834, %v833
    %v840 = vpack.c.b16 %v836, %v835
    %vm845 = vcmask 523264
    %v847 = vsel %vm845, %v807, 0
    %849 = vmatprep.subr.bf16.mxu0 0
    %850 = vmatpush1.bf16.msra.mxu0 %v837
    %851 = vmatprep.subr.bf16.mxu0 0
    %852 = vmatpush1.bf16.msra.mxu0 %v838
    %853 = vmatprep.subr.bf16.mxu0 0
    %854 = vmatpush1.bf16.msra.mxu0 %v839
    %855 = vmatprep.subr.bf16.mxu0 0
    %856 = vmatpush1.bf16.msra.mxu0 %v840
    %857 = vmatprep.subr.bf16.mxu0 0
    %858 = vmatpush1.bf16.msra.mxu0 0
    %859 = vmatprep.subr.bf16.mxu0 0
    %860 = vmatpush1.bf16.msra.mxu0 0
    %861 = vmatprep.subr.bf16.mxu0 0
    %862 = vmatpush1.bf16.msra.mxu0 0
    %863 = vmatprep.subr.bf16.mxu0 0
    %864 = vmatpush1.bf16.msra.mxu0 0
    %865 = vmatprep.subr.bf16.mxu0 0
    %866 = vmatpush1.bf16.msra.mxu0 0
    %867 = vmatprep.subr.bf16.mxu0 0
    %868 = vmatpush1.bf16.msra.mxu0 0
    %869 = vmatprep.subr.bf16.mxu0 0
    %870 = vmatpush1.bf16.msra.mxu0 0
    %871 = vmatprep.subr.bf16.mxu0 0
    %872 = vmatpush1.bf16.msra.mxu0 0
    %873 = vmatprep.subr.bf16.mxu0 0
    %874 = vmatpush1.bf16.msra.mxu0 0
    %875 = vmatprep.subr.bf16.mxu0 0
    %876 = vmatpush1.bf16.msra.mxu0 0
    %877 = vmatprep.subr.bf16.mxu0 0
    %878 = vmatpush1.bf16.msra.mxu0 0
    %879 = vmatprep.subr.bf16.mxu0 0
    %880 = vmatpush1.bf16.msra.mxu0 0
    %881 = vmatprep.mubr.bf16.mxu0 0
    %882 = vmatmul.mubr.bf16.gmra.mrb[0].mxu0 %v847
    %v883 = vpop.f32.mrb[0].mxu0
    %v884 = vadd.f32 %v820, %v883
    %v885 = vpop.f32.mrb[0].mxu0
    %v886 = vpop.f32.mrb[0].mxu0
    %v887 = vpop.f32.mrb[0].mxu0
    %888 = vdwg.mxu0
    %v889 = vadd.f32 %v884, %v732
    %v890 = vld [vmem:[%s4 + $0x6] sm:$0x1]
    %v891 = vld [vmem:[%s4 + $0x7] sm:$0x1]
    %v892 = vsel %vm39, %v889, 0.0
    %893 = vadd.xlane.f32.xlu0 %v892
    %v894 = vpop.xlane.xlu0 %893
    %v895 = vmul.f32 %v894, %v43
    %v896 = vmul.f32 %v889, %v889
    %v897 = vsel %vm39, %v896, 0.0
    %898 = vadd.xlane.f32.xlu0 %v897
    %v899 = vpop.xlane.xlu0 %898
    %v900 = vmul.f32 %v899, %v43
    %v901 = vmul.f32 %v895, %v895
    %v902 = vsub.f32 %v900, %v901
    %v903 = vmax.f32 %v902, 0.0
    %v904 = vsub.f32 %v889, %v895
    %v905 = vadd.f32 %v903, 1e-12
    %v906 = vrsqrt.pop %v905
    %v907 = vmul.f32 %v904, %v906
    %v908 = vlaneseq
    %v909 = vshrl.u32 %v908, 7
    %v910 = vsub.s32 0, %v909
    %v911 = vrot.slane %v890, %v910
    %v912 = vmul.f32 %v907, %v911
    %v913 = vlaneseq
    %v914 = vshrl.u32 %v913, 7
    %v915 = vsub.s32 0, %v914
    %v916 = vrot.slane %v891, %v915
    %v917 = vadd.f32 %v912, %v916
    %v918 = vpack.c.bf16 %v917, %v917
    %s919 = scalar_lea.vmem %s2, 32
    %v920 = vld [vmem:[%s919] sm:$0xf]
    %v921 = vld [vmem:[%s919 + $0x8] sm:$0xf]
    %v922 = vld [vmem:[%s919 + $0x10] sm:$0xf]
    %v923 = vld [vmem:[%s919 + $0x18] sm:$0xf]
    %s924 = scalar_lea.vmem %s4, 8
    %v925 = vld [vmem:[%s924] sm:$0x1]
    %v926 = vlaneseq
    %v927 = vshrl.u32 %v926, 7
    %v928 = vsub.s32 0, %v927
    %v929 = vrot.slane %v925, %v928
    %v934 = vunpack.c.l.b16 %v920
    %v935 = vunpack.c.l.b16 %v921
    %v936 = vunpack.c.l.b16 %v922
    %v937 = vunpack.c.l.b16 %v923
    %v938 = vpack.c.b16 %v935, %v934
    %v939 = vpack.c.b16 %v937, %v936
    %v943 = vsel %vm39, %v918, 0
    %945 = vmatprep.subr.bf16.mxu0 0
    %946 = vmatpush1.bf16.msra.mxu0 %v938
    %947 = vmatprep.subr.bf16.mxu0 0
    %948 = vmatpush1.bf16.msra.mxu0 %v939
    %949 = vmatprep.subr.bf16.mxu0 0
    %950 = vmatpush1.bf16.msra.mxu0 0
    %951 = vmatprep.subr.bf16.mxu0 0
    %952 = vmatpush1.bf16.msra.mxu0 0
    %953 = vmatprep.subr.bf16.mxu0 0
    %954 = vmatpush1.bf16.msra.mxu0 0
    %955 = vmatprep.subr.bf16.mxu0 0
    %956 = vmatpush1.bf16.msra.mxu0 0
    %957 = vmatprep.subr.bf16.mxu0 0
    %958 = vmatpush1.bf16.msra.mxu0 0
    %959 = vmatprep.subr.bf16.mxu0 0
    %960 = vmatpush1.bf16.msra.mxu0 0
    %961 = vmatprep.subr.bf16.mxu0 0
    %962 = vmatpush1.bf16.msra.mxu0 0
    %963 = vmatprep.subr.bf16.mxu0 0
    %964 = vmatpush1.bf16.msra.mxu0 0
    %965 = vmatprep.subr.bf16.mxu0 0
    %966 = vmatpush1.bf16.msra.mxu0 0
    %967 = vmatprep.subr.bf16.mxu0 0
    %968 = vmatpush1.bf16.msra.mxu0 0
    %969 = vmatprep.subr.bf16.mxu0 0
    %970 = vmatpush1.bf16.msra.mxu0 0
    %971 = vmatprep.subr.bf16.mxu0 0
    %972 = vmatpush1.bf16.msra.mxu0 0
    %973 = vmatprep.subr.bf16.mxu0 0
    %974 = vmatpush1.bf16.msra.mxu0 0
    %975 = vmatprep.subr.bf16.mxu0 0
    %976 = vmatpush1.bf16.msra.mxu0 0
    %977 = vmatprep.mubr.bf16.mxu0 0
    %978 = vmatmul.mubr.bf16.gmra.mrb[0].mxu0 %v943
    %v979 = vpop.f32.mrb[0].mxu0
    %v980 = vadd.f32 %v929, %v979
    %v981 = vpop.f32.mrb[0].mxu0
    %v982 = vpop.f32.mrb[0].mxu0
    %v983 = vpop.f32.mrb[0].mxu0
    %984 = vdwg.mxu0
    %985 = vrot.lane.b32.xlu0 %v938, 96
    %v986 = vpop.permute.xlu0 %985
    %987 = vrot.lane.b32.xlu0 %v939, 96
    %v988 = vpop.permute.xlu0 %987
    %992 = vrot.lane.b32.xlu0 %v929, 96
    %v993 = vpop.permute.xlu0 %992
    %995 = vmatprep.subr.bf16.mxu0 0
    %996 = vmatpush1.bf16.msra.mxu0 %v986
    %997 = vmatprep.subr.bf16.mxu0 0
    %998 = vmatpush1.bf16.msra.mxu0 %v988
    %999 = vmatprep.subr.bf16.mxu0 0
    %1000 = vmatpush1.bf16.msra.mxu0 0
    %1001 = vmatprep.subr.bf16.mxu0 0
    %1002 = vmatpush1.bf16.msra.mxu0 0
    %1003 = vmatprep.subr.bf16.mxu0 0
    %1004 = vmatpush1.bf16.msra.mxu0 0
    %1005 = vmatprep.subr.bf16.mxu0 0
    %1006 = vmatpush1.bf16.msra.mxu0 0
    %1007 = vmatprep.subr.bf16.mxu0 0
    %1008 = vmatpush1.bf16.msra.mxu0 0
    %1009 = vmatprep.subr.bf16.mxu0 0
    %1010 = vmatpush1.bf16.msra.mxu0 0
    %1011 = vmatprep.subr.bf16.mxu0 0
    %1012 = vmatpush1.bf16.msra.mxu0 0
    %1013 = vmatprep.subr.bf16.mxu0 0
    %1014 = vmatpush1.bf16.msra.mxu0 0
    %1015 = vmatprep.subr.bf16.mxu0 0
    %1016 = vmatpush1.bf16.msra.mxu0 0
    %1017 = vmatprep.subr.bf16.mxu0 0
    %1018 = vmatpush1.bf16.msra.mxu0 0
    %1019 = vmatprep.subr.bf16.mxu0 0
    %1020 = vmatpush1.bf16.msra.mxu0 0
    %1021 = vmatprep.subr.bf16.mxu0 0
    %1022 = vmatpush1.bf16.msra.mxu0 0
    %1023 = vmatprep.subr.bf16.mxu0 0
    %1024 = vmatpush1.bf16.msra.mxu0 0
    %1025 = vmatprep.subr.bf16.mxu0 0
    %1026 = vmatpush1.bf16.msra.mxu0 0
    %1027 = vmatprep.mubr.bf16.mxu0 0
    %1028 = vmatmul.mubr.bf16.gmra.mrb[0].mxu0 %v943
    %v1029 = vpop.f32.mrb[0].mxu0
    %v1030 = vadd.f32 %v993, %v1029
    %v1031 = vpop.f32.mrb[0].mxu0
    %v1032 = vpop.f32.mrb[0].mxu0
    %v1033 = vpop.f32.mrb[0].mxu0
    %1034 = vdwg.mxu0
    %1035 = vrot.lane.b32.xlu0 %v938, 64
    %v1036 = vpop.permute.xlu0 %1035
    %1037 = vrot.lane.b32.xlu0 %v939, 64
    %v1038 = vpop.permute.xlu0 %1037
    %1041 = vrot.lane.b32.xlu0 %v929, 64
    %v1042 = vpop.permute.xlu0 %1041
    %1044 = vmatprep.subr.bf16.mxu0 0
    %1045 = vmatpush1.bf16.msra.mxu0 %v1036
    %1046 = vmatprep.subr.bf16.mxu0 0
    %1047 = vmatpush1.bf16.msra.mxu0 %v1038
    %1048 = vmatprep.subr.bf16.mxu0 0
    %1049 = vmatpush1.bf16.msra.mxu0 0
    %1050 = vmatprep.subr.bf16.mxu0 0
    %1051 = vmatpush1.bf16.msra.mxu0 0
    %1052 = vmatprep.subr.bf16.mxu0 0
    %1053 = vmatpush1.bf16.msra.mxu0 0
    %1054 = vmatprep.subr.bf16.mxu0 0
    %1055 = vmatpush1.bf16.msra.mxu0 0
    %1056 = vmatprep.subr.bf16.mxu0 0
    %1057 = vmatpush1.bf16.msra.mxu0 0
    %1058 = vmatprep.subr.bf16.mxu0 0
    %1059 = vmatpush1.bf16.msra.mxu0 0
    %1060 = vmatprep.subr.bf16.mxu0 0
    %1061 = vmatpush1.bf16.msra.mxu0 0
    %1062 = vmatprep.subr.bf16.mxu0 0
    %1063 = vmatpush1.bf16.msra.mxu0 0
    %1064 = vmatprep.subr.bf16.mxu0 0
    %1065 = vmatpush1.bf16.msra.mxu0 0
    %1066 = vmatprep.subr.bf16.mxu0 0
    %1067 = vmatpush1.bf16.msra.mxu0 0
    %1068 = vmatprep.subr.bf16.mxu0 0
    %1069 = vmatpush1.bf16.msra.mxu0 0
    %1070 = vmatprep.subr.bf16.mxu0 0
    %1071 = vmatpush1.bf16.msra.mxu0 0
    %1072 = vmatprep.subr.bf16.mxu0 0
    %1073 = vmatpush1.bf16.msra.mxu0 0
    %1074 = vmatprep.subr.bf16.mxu0 0
    %1075 = vmatpush1.bf16.msra.mxu0 0
    %1076 = vmatprep.mubr.bf16.mxu0 0
    %1077 = vmatmul.mubr.bf16.gmra.mrb[0].mxu0 %v943
    %v1078 = vpop.f32.mrb[0].mxu0
    %v1079 = vadd.f32 %v1042, %v1078
    %v1080 = vpop.f32.mrb[0].mxu0
    %v1081 = vpop.f32.mrb[0].mxu0
    %v1082 = vpop.f32.mrb[0].mxu0
    %1083 = vdwg.mxu0
    %v1084 = vpack.c.bf16 %v980, %v980
    %v1085 = vpack.c.bf16 %v1030, %v1030
    %v1087 = vsel %vm233, %v1084, 0
    %v1090 = vsel %vm233, %v1085, 0
    %1092 = vmatprep.subr.bf16.mxu0 0
    %1093 = vmatpush1.bf16.xpose.msra.mxu0 %v1090
    %1094 = vmatprep.subr.bf16.mxu0 0
    %1095 = vmatpush1.bf16.xpose.msra.mxu0 0
    %1096 = vmatprep.subr.bf16.mxu0 0
    %1097 = vmatpush1.bf16.xpose.msra.mxu0 0
    %1098 = vmatprep.subr.bf16.mxu0 0
    %1099 = vmatpush1.bf16.xpose.msra.mxu0 0
    %1100 = vmatprep.subr.bf16.mxu0 0
    %1101 = vmatpush1.bf16.xpose.msra.mxu0 0
    %1102 = vmatprep.subr.bf16.mxu0 0
    %1103 = vmatpush1.bf16.xpose.msra.mxu0 0
    %1104 = vmatprep.subr.bf16.mxu0 0
    %1105 = vmatpush1.bf16.xpose.msra.mxu0 0
    %1106 = vmatprep.subr.bf16.mxu0 0
    %1107 = vmatpush1.bf16.xpose.msra.mxu0 0
    %1108 = vmatprep.subr.bf16.mxu0 0
    %1109 = vmatpush1.bf16.xpose.msra.mxu0 0
    %1110 = vmatprep.subr.bf16.mxu0 0
    %1111 = vmatpush1.bf16.xpose.msra.mxu0 0
    %1112 = vmatprep.subr.bf16.mxu0 0
    %1113 = vmatpush1.bf16.xpose.msra.mxu0 0
    %1114 = vmatprep.subr.bf16.mxu0 0
    %1115 = vmatpush1.bf16.xpose.msra.mxu0 0
    %1116 = vmatprep.subr.bf16.mxu0 0
    %1117 = vmatpush1.bf16.xpose.msra.mxu0 0
    %1118 = vmatprep.subr.bf16.mxu0 0
    %1119 = vmatpush1.bf16.xpose.msra.mxu0 0
    %1120 = vmatprep.subr.bf16.mxu0 0
    %1121 = vmatpush1.bf16.xpose.msra.mxu0 0
    %1122 = vmatprep.subr.bf16.mxu0 0
    %1123 = vmatpush1.bf16.xpose.msra.mxu0 0
    %1124 = vmatprep.mubr.bf16.mxu0 0
    %1125 = vmatmul.mubr.bf16.gmra.mrb[0].mxu0 %v1087
    %v1126 = vpop.f32.mrb[0].mxu0
    %v1127 = vadd.f32 0.0, %v1126
    %v1128 = vpop.f32.mrb[0].mxu0
    %v1129 = vpop.f32.mrb[0].mxu0
    %v1130 = vpop.f32.mrb[0].mxu0
    %1131 = vdwg.mxu0
    %v1132 = vmul.f32 %v1127, 0.25
    %v1133 = vsel %vm281, %v1132, -inf
    %1134 = vmax.xlane.f32.xlu0 %v1133
    %v1135 = vpop.xlane.xlu0 %1134
    %v1136 = vsub.f32 %v1132, %v1135
    %v1137 = vmul.f32 %v1136, 1.442695
    %v1138 = vpow.pop %v1137
    %v1139 = vsel %vm281, %v1138, 0.0
    %1140 = vadd.xlane.f32.xlu0 %v1139
    %v1141 = vpop.xlane.xlu0 %1140
    %v1142 = vrcp.pop %v1141
    %v1143 = vmul.f32 %v1138, %v1142
    %v1144 = vpack.c.bf16 %v1143, %v1143
    %v1145 = vpack.c.bf16 %v1079, %v1079
    %v1147 = vsel %vm281, %v1144, 0
    %v1150 = vsel %vm298, %v1145, 0
    %1152 = vmatprep.subr.bf16.mxu0 0
    %1153 = vmatpush1.bf16.msra.mxu0 %v1150
    %1154 = vmatprep.subr.bf16.mxu0 0
    %1155 = vmatpush1.bf16.msra.mxu0 0
    %1156 = vmatprep.subr.bf16.mxu0 0
    %1157 = vmatpush1.bf16.msra.mxu0 0
    %1158 = vmatprep.subr.bf16.mxu0 0
    %1159 = vmatpush1.bf16.msra.mxu0 0
    %1160 = vmatprep.subr.bf16.mxu0 0
    %1161 = vmatpush1.bf16.msra.mxu0 0
    %1162 = vmatprep.subr.bf16.mxu0 0
    %1163 = vmatpush1.bf16.msra.mxu0 0
    %1164 = vmatprep.subr.bf16.mxu0 0
    %1165 = vmatpush1.bf16.msra.mxu0 0
    %1166 = vmatprep.subr.bf16.mxu0 0
    %1167 = vmatpush1.bf16.msra.mxu0 0
    %1168 = vmatprep.subr.bf16.mxu0 0
    %1169 = vmatpush1.bf16.msra.mxu0 0
    %1170 = vmatprep.subr.bf16.mxu0 0
    %1171 = vmatpush1.bf16.msra.mxu0 0
    %1172 = vmatprep.subr.bf16.mxu0 0
    %1173 = vmatpush1.bf16.msra.mxu0 0
    %1174 = vmatprep.subr.bf16.mxu0 0
    %1175 = vmatpush1.bf16.msra.mxu0 0
    %1176 = vmatprep.subr.bf16.mxu0 0
    %1177 = vmatpush1.bf16.msra.mxu0 0
    %1178 = vmatprep.subr.bf16.mxu0 0
    %1179 = vmatpush1.bf16.msra.mxu0 0
    %1180 = vmatprep.subr.bf16.mxu0 0
    %1181 = vmatpush1.bf16.msra.mxu0 0
    %1182 = vmatprep.subr.bf16.mxu0 0
    %1183 = vmatpush1.bf16.msra.mxu0 0
    %1184 = vmatprep.mubr.bf16.mxu0 0
    %1185 = vmatmul.mubr.bf16.gmra.mrb[0].mxu0 %v1147
    %v1186 = vpop.f32.mrb[0].mxu0
    %v1187 = vadd.f32 0.0, %v1186
    %v1188 = vpop.f32.mrb[0].mxu0
    %v1189 = vpop.f32.mrb[0].mxu0
    %v1190 = vpop.f32.mrb[0].mxu0
    %1191 = vdwg.mxu0
    %v1192 = vpack.c.bf16 %v1187, %v1187
    %v1193 = vld [vmem:[%s919] sm:$0xf]
    %v1194 = vld [vmem:[%s919 + $0x8] sm:$0xf]
    %1195 = vrot.lane.b32.xlu0 %v938, 112
    %v1196 = vpop.permute.xlu0 %1195
    %1197 = vrot.lane.b32.xlu0 %v939, 112
    %v1198 = vpop.permute.xlu0 %1197
    %1201 = vrot.lane.b32.xlu0 %v929, 112
    %v1202 = vpop.permute.xlu0 %1201
    %1204 = vmatprep.subr.bf16.mxu0 0
    %1205 = vmatpush1.bf16.msra.mxu0 %v1196
    %1206 = vmatprep.subr.bf16.mxu0 0
    %1207 = vmatpush1.bf16.msra.mxu0 %v1198
    %1208 = vmatprep.subr.bf16.mxu0 0
    %1209 = vmatpush1.bf16.msra.mxu0 0
    %1210 = vmatprep.subr.bf16.mxu0 0
    %1211 = vmatpush1.bf16.msra.mxu0 0
    %1212 = vmatprep.subr.bf16.mxu0 0
    %1213 = vmatpush1.bf16.msra.mxu0 0
    %1214 = vmatprep.subr.bf16.mxu0 0
    %1215 = vmatpush1.bf16.msra.mxu0 0
    %1216 = vmatprep.subr.bf16.mxu0 0
    %1217 = vmatpush1.bf16.msra.mxu0 0
    %1218 = vmatprep.subr.bf16.mxu0 0
    %1219 = vmatpush1.bf16.msra.mxu0 0
    %1220 = vmatprep.subr.bf16.mxu0 0
    %1221 = vmatpush1.bf16.msra.mxu0 0
    %1222 = vmatprep.subr.bf16.mxu0 0
    %1223 = vmatpush1.bf16.msra.mxu0 0
    %1224 = vmatprep.subr.bf16.mxu0 0
    %1225 = vmatpush1.bf16.msra.mxu0 0
    %1226 = vmatprep.subr.bf16.mxu0 0
    %1227 = vmatpush1.bf16.msra.mxu0 0
    %1228 = vmatprep.subr.bf16.mxu0 0
    %1229 = vmatpush1.bf16.msra.mxu0 0
    %1230 = vmatprep.subr.bf16.mxu0 0
    %1231 = vmatpush1.bf16.msra.mxu0 0
    %1232 = vmatprep.subr.bf16.mxu0 0
    %1233 = vmatpush1.bf16.msra.mxu0 0
    %1234 = vmatprep.subr.bf16.mxu0 0
    %1235 = vmatpush1.bf16.msra.mxu0 0
    %1236 = vmatprep.mubr.bf16.mxu0 0
    %1237 = vmatmul.mubr.bf16.gmra.mrb[0].mxu0 %v943
    %v1238 = vpop.f32.mrb[0].mxu0
    %v1239 = vadd.f32 %v1202, %v1238
    %v1240 = vpop.f32.mrb[0].mxu0
    %v1241 = vpop.f32.mrb[0].mxu0
    %v1242 = vpop.f32.mrb[0].mxu0
    %1243 = vdwg.mxu0
    %1244 = vrot.lane.b32.xlu0 %v938, 80
    %v1245 = vpop.permute.xlu0 %1244
    %1246 = vrot.lane.b32.xlu0 %v939, 80
    %v1247 = vpop.permute.xlu0 %1246
    %1250 = vrot.lane.b32.xlu0 %v929, 80
    %v1251 = vpop.permute.xlu0 %1250
    %1253 = vmatprep.subr.bf16.mxu0 0
    %1254 = vmatpush1.bf16.msra.mxu0 %v1245
    %1255 = vmatprep.subr.bf16.mxu0 0
    %1256 = vmatpush1.bf16.msra.mxu0 %v1247
    %1257 = vmatprep.subr.bf16.mxu0 0
    %1258 = vmatpush1.bf16.msra.mxu0 0
    %1259 = vmatprep.subr.bf16.mxu0 0
    %1260 = vmatpush1.bf16.msra.mxu0 0
    %1261 = vmatprep.subr.bf16.mxu0 0
    %1262 = vmatpush1.bf16.msra.mxu0 0
    %1263 = vmatprep.subr.bf16.mxu0 0
    %1264 = vmatpush1.bf16.msra.mxu0 0
    %1265 = vmatprep.subr.bf16.mxu0 0
    %1266 = vmatpush1.bf16.msra.mxu0 0
    %1267 = vmatprep.subr.bf16.mxu0 0
    %1268 = vmatpush1.bf16.msra.mxu0 0
    %1269 = vmatprep.subr.bf16.mxu0 0
    %1270 = vmatpush1.bf16.msra.mxu0 0
    %1271 = vmatprep.subr.bf16.mxu0 0
    %1272 = vmatpush1.bf16.msra.mxu0 0
    %1273 = vmatprep.subr.bf16.mxu0 0
    %1274 = vmatpush1.bf16.msra.mxu0 0
    %1275 = vmatprep.subr.bf16.mxu0 0
    %1276 = vmatpush1.bf16.msra.mxu0 0
    %1277 = vmatprep.subr.bf16.mxu0 0
    %1278 = vmatpush1.bf16.msra.mxu0 0
    %1279 = vmatprep.subr.bf16.mxu0 0
    %1280 = vmatpush1.bf16.msra.mxu0 0
    %1281 = vmatprep.subr.bf16.mxu0 0
    %1282 = vmatpush1.bf16.msra.mxu0 0
    %1283 = vmatprep.subr.bf16.mxu0 0
    %1284 = vmatpush1.bf16.msra.mxu0 0
    %1285 = vmatprep.mubr.bf16.mxu0 0
    %1286 = vmatmul.mubr.bf16.gmra.mrb[0].mxu0 %v943
    %v1287 = vpop.f32.mrb[0].mxu0
    %v1288 = vadd.f32 %v1251, %v1287
    %v1289 = vpop.f32.mrb[0].mxu0
    %v1290 = vpop.f32.mrb[0].mxu0
    %v1291 = vpop.f32.mrb[0].mxu0
    %1292 = vdwg.mxu0
    %1293 = vrot.lane.b32.xlu0 %v938, 48
    %v1294 = vpop.permute.xlu0 %1293
    %1295 = vrot.lane.b32.xlu0 %v939, 48
    %v1296 = vpop.permute.xlu0 %1295
    %1299 = vrot.lane.b32.xlu0 %v929, 48
    %v1300 = vpop.permute.xlu0 %1299
    %1302 = vmatprep.subr.bf16.mxu0 0
    %1303 = vmatpush1.bf16.msra.mxu0 %v1294
    %1304 = vmatprep.subr.bf16.mxu0 0
    %1305 = vmatpush1.bf16.msra.mxu0 %v1296
    %1306 = vmatprep.subr.bf16.mxu0 0
    %1307 = vmatpush1.bf16.msra.mxu0 0
    %1308 = vmatprep.subr.bf16.mxu0 0
    %1309 = vmatpush1.bf16.msra.mxu0 0
    %1310 = vmatprep.subr.bf16.mxu0 0
    %1311 = vmatpush1.bf16.msra.mxu0 0
    %1312 = vmatprep.subr.bf16.mxu0 0
    %1313 = vmatpush1.bf16.msra.mxu0 0
    %1314 = vmatprep.subr.bf16.mxu0 0
    %1315 = vmatpush1.bf16.msra.mxu0 0
    %1316 = vmatprep.subr.bf16.mxu0 0
    %1317 = vmatpush1.bf16.msra.mxu0 0
    %1318 = vmatprep.subr.bf16.mxu0 0
    %1319 = vmatpush1.bf16.msra.mxu0 0
    %1320 = vmatprep.subr.bf16.mxu0 0
    %1321 = vmatpush1.bf16.msra.mxu0 0
    %1322 = vmatprep.subr.bf16.mxu0 0
    %1323 = vmatpush1.bf16.msra.mxu0 0
    %1324 = vmatprep.subr.bf16.mxu0 0
    %1325 = vmatpush1.bf16.msra.mxu0 0
    %1326 = vmatprep.subr.bf16.mxu0 0
    %1327 = vmatpush1.bf16.msra.mxu0 0
    %1328 = vmatprep.subr.bf16.mxu0 0
    %1329 = vmatpush1.bf16.msra.mxu0 0
    %1330 = vmatprep.subr.bf16.mxu0 0
    %1331 = vmatpush1.bf16.msra.mxu0 0
    %1332 = vmatprep.subr.bf16.mxu0 0
    %1333 = vmatpush1.bf16.msra.mxu0 0
    %1334 = vmatprep.mubr.bf16.mxu0 0
    %1335 = vmatmul.mubr.bf16.gmra.mrb[0].mxu0 %v943
    %v1336 = vpop.f32.mrb[0].mxu0
    %v1337 = vadd.f32 %v1300, %v1336
    %v1338 = vpop.f32.mrb[0].mxu0
    %v1339 = vpop.f32.mrb[0].mxu0
    %v1340 = vpop.f32.mrb[0].mxu0
    %1341 = vdwg.mxu0
    %v1342 = vpack.c.bf16 %v1239, %v1239
    %v1343 = vpack.c.bf16 %v1288, %v1288
    %v1345 = vsel %vm233, %v1342, 0
    %v1348 = vsel %vm233, %v1343, 0
    %1350 = vmatprep.subr.bf16.mxu0 0
    %1351 = vmatpush1.bf16.xpose.msra.mxu0 %v1348
    %1352 = vmatprep.subr.bf16.mxu0 0
    %1353 = vmatpush1.bf16.xpose.msra.mxu0 0
    %1354 = vmatprep.subr.bf16.mxu0 0
    %1355 = vmatpush1.bf16.xpose.msra.mxu0 0
    %1356 = vmatprep.subr.bf16.mxu0 0
    %1357 = vmatpush1.bf16.xpose.msra.mxu0 0
    %1358 = vmatprep.subr.bf16.mxu0 0
    %1359 = vmatpush1.bf16.xpose.msra.mxu0 0
    %1360 = vmatprep.subr.bf16.mxu0 0
    %1361 = vmatpush1.bf16.xpose.msra.mxu0 0
    %1362 = vmatprep.subr.bf16.mxu0 0
    %1363 = vmatpush1.bf16.xpose.msra.mxu0 0
    %1364 = vmatprep.subr.bf16.mxu0 0
    %1365 = vmatpush1.bf16.xpose.msra.mxu0 0
    %1366 = vmatprep.subr.bf16.mxu0 0
    %1367 = vmatpush1.bf16.xpose.msra.mxu0 0
    %1368 = vmatprep.subr.bf16.mxu0 0
    %1369 = vmatpush1.bf16.xpose.msra.mxu0 0
    %1370 = vmatprep.subr.bf16.mxu0 0
    %1371 = vmatpush1.bf16.xpose.msra.mxu0 0
    %1372 = vmatprep.subr.bf16.mxu0 0
    %1373 = vmatpush1.bf16.xpose.msra.mxu0 0
    %1374 = vmatprep.subr.bf16.mxu0 0
    %1375 = vmatpush1.bf16.xpose.msra.mxu0 0
    %1376 = vmatprep.subr.bf16.mxu0 0
    %1377 = vmatpush1.bf16.xpose.msra.mxu0 0
    %1378 = vmatprep.subr.bf16.mxu0 0
    %1379 = vmatpush1.bf16.xpose.msra.mxu0 0
    %1380 = vmatprep.subr.bf16.mxu0 0
    %1381 = vmatpush1.bf16.xpose.msra.mxu0 0
    %1382 = vmatprep.mubr.bf16.mxu0 0
    %1383 = vmatmul.mubr.bf16.gmra.mrb[0].mxu0 %v1345
    %v1384 = vpop.f32.mrb[0].mxu0
    %v1385 = vadd.f32 0.0, %v1384
    %v1386 = vpop.f32.mrb[0].mxu0
    %v1387 = vpop.f32.mrb[0].mxu0
    %v1388 = vpop.f32.mrb[0].mxu0
    %1389 = vdwg.mxu0
    %v1390 = vmul.f32 %v1385, 0.25
    %v1391 = vsel %vm281, %v1390, -inf
    %1392 = vmax.xlane.f32.xlu0 %v1391
    %v1393 = vpop.xlane.xlu0 %1392
    %v1394 = vsub.f32 %v1390, %v1393
    %v1395 = vmul.f32 %v1394, 1.442695
    %v1396 = vpow.pop %v1395
    %v1397 = vsel %vm281, %v1396, 0.0
    %1398 = vadd.xlane.f32.xlu0 %v1397
    %v1399 = vpop.xlane.xlu0 %1398
    %v1400 = vrcp.pop %v1399
    %v1401 = vmul.f32 %v1396, %v1400
    %v1402 = vpack.c.bf16 %v1401, %v1401
    %v1403 = vpack.c.bf16 %v1337, %v1337
    %v1405 = vsel %vm281, %v1402, 0
    %v1408 = vsel %vm298, %v1403, 0
    %1410 = vmatprep.subr.bf16.mxu0 0
    %1411 = vmatpush1.bf16.msra.mxu0 %v1408
    %1412 = vmatprep.subr.bf16.mxu0 0
    %1413 = vmatpush1.bf16.msra.mxu0 0
    %1414 = vmatprep.subr.bf16.mxu0 0
    %1415 = vmatpush1.bf16.msra.mxu0 0
    %1416 = vmatprep.subr.bf16.mxu0 0
    %1417 = vmatpush1.bf16.msra.mxu0 0
    %1418 = vmatprep.subr.bf16.mxu0 0
    %1419 = vmatpush1.bf16.msra.mxu0 0
    %1420 = vmatprep.subr.bf16.mxu0 0
    %1421 = vmatpush1.bf16.msra.mxu0 0
    %1422 = vmatprep.subr.bf16.mxu0 0
    %1423 = vmatpush1.bf16.msra.mxu0 0
    %1424 = vmatprep.subr.bf16.mxu0 0
    %1425 = vmatpush1.bf16.msra.mxu0 0
    %1426 = vmatprep.subr.bf16.mxu0 0
    %1427 = vmatpush1.bf16.msra.mxu0 0
    %1428 = vmatprep.subr.bf16.mxu0 0
    %1429 = vmatpush1.bf16.msra.mxu0 0
    %1430 = vmatprep.subr.bf16.mxu0 0
    %1431 = vmatpush1.bf16.msra.mxu0 0
    %1432 = vmatprep.subr.bf16.mxu0 0
    %1433 = vmatpush1.bf16.msra.mxu0 0
    %1434 = vmatprep.subr.bf16.mxu0 0
    %1435 = vmatpush1.bf16.msra.mxu0 0
    %1436 = vmatprep.subr.bf16.mxu0 0
    %1437 = vmatpush1.bf16.msra.mxu0 0
    %1438 = vmatprep.subr.bf16.mxu0 0
    %1439 = vmatpush1.bf16.msra.mxu0 0
    %1440 = vmatprep.subr.bf16.mxu0 0
    %1441 = vmatpush1.bf16.msra.mxu0 0
    %1442 = vmatprep.mubr.bf16.mxu0 0
    %1443 = vmatmul.mubr.bf16.gmra.mrb[0].mxu0 %v1405
    %v1444 = vpop.f32.mrb[0].mxu0
    %v1445 = vadd.f32 0.0, %v1444
    %v1446 = vpop.f32.mrb[0].mxu0
    %v1447 = vpop.f32.mrb[0].mxu0
    %v1448 = vpop.f32.mrb[0].mxu0
    %1449 = vdwg.mxu0
    %v1450 = vpack.c.bf16 %v1445, %v1445
    %1451 = vrot.lane.b32.xlu0 %v939, 32
    %v1452 = vpop.permute.xlu0 %1451
    %v1455 = vsel %vm233, %v1450, 0
    %1457 = vmatprep.subr.bf16.mxu0 0
    %1458 = vmatpush1.bf16.msra.mxu0 %v1452
    %1459 = vmatprep.subr.bf16.mxu0 0
    %1460 = vmatpush1.bf16.msra.mxu0 0
    %1461 = vmatprep.subr.bf16.mxu0 0
    %1462 = vmatpush1.bf16.msra.mxu0 0
    %1463 = vmatprep.subr.bf16.mxu0 0
    %1464 = vmatpush1.bf16.msra.mxu0 0
    %1465 = vmatprep.subr.bf16.mxu0 0
    %1466 = vmatpush1.bf16.msra.mxu0 0
    %1467 = vmatprep.subr.bf16.mxu0 0
    %1468 = vmatpush1.bf16.msra.mxu0 0
    %1469 = vmatprep.subr.bf16.mxu0 0
    %1470 = vmatpush1.bf16.msra.mxu0 0
    %1471 = vmatprep.subr.bf16.mxu0 0
    %1472 = vmatpush1.bf16.msra.mxu0 0
    %1473 = vmatprep.subr.bf16.mxu0 0
    %1474 = vmatpush1.bf16.msra.mxu0 0
    %1475 = vmatprep.subr.bf16.mxu0 0
    %1476 = vmatpush1.bf16.msra.mxu0 0
    %1477 = vmatprep.subr.bf16.mxu0 0
    %1478 = vmatpush1.bf16.msra.mxu0 0
    %1479 = vmatprep.subr.bf16.mxu0 0
    %1480 = vmatpush1.bf16.msra.mxu0 0
    %1481 = vmatprep.subr.bf16.mxu0 0
    %1482 = vmatpush1.bf16.msra.mxu0 0
    %1483 = vmatprep.subr.bf16.mxu0 0
    %1484 = vmatpush1.bf16.msra.mxu0 0
    %1485 = vmatprep.subr.bf16.mxu0 0
    %1486 = vmatpush1.bf16.msra.mxu0 0
    %1487 = vmatprep.subr.bf16.mxu0 0
    %1488 = vmatpush1.bf16.msra.mxu0 0
    %1489 = vmatprep.mubr.bf16.mxu0 0
    %1490 = vmatmul.mubr.bf16.gmra.mrb[0].mxu0 %v1455
    %v1491 = vpop.f32.mrb[0].mxu0
    %v1492 = vadd.f32 0.0, %v1491
    %v1493 = vpop.f32.mrb[0].mxu0
    %v1494 = vpop.f32.mrb[0].mxu0
    %v1495 = vpop.f32.mrb[0].mxu0
    %1496 = vdwg.mxu0
    %v1499 = vunpack.c.l.b16 %v1193
    %v1500 = vunpack.c.l.b16 %v1194
    %v1501 = vpack.c.b16 %v1500, %v1499
    %1502 = vrot.lane.b32.xlu0 %v1501, 32
    %v1503 = vpop.permute.xlu0 %1502
    %v1506 = vsel %vm233, %v1192, 0
    %1508 = vmatprep.subr.bf16.mxu0 0
    %1509 = vmatpush1.bf16.msra.mxu0 %v1503
    %1510 = vmatprep.subr.bf16.mxu0 0
    %1511 = vmatpush1.bf16.msra.mxu0 0
    %1512 = vmatprep.subr.bf16.mxu0 0
    %1513 = vmatpush1.bf16.msra.mxu0 0
    %1514 = vmatprep.subr.bf16.mxu0 0
    %1515 = vmatpush1.bf16.msra.mxu0 0
    %1516 = vmatprep.subr.bf16.mxu0 0
    %1517 = vmatpush1.bf16.msra.mxu0 0
    %1518 = vmatprep.subr.bf16.mxu0 0
    %1519 = vmatpush1.bf16.msra.mxu0 0
    %1520 = vmatprep.subr.bf16.mxu0 0
    %1521 = vmatpush1.bf16.msra.mxu0 0
    %1522 = vmatprep.subr.bf16.mxu0 0
    %1523 = vmatpush1.bf16.msra.mxu0 0
    %1524 = vmatprep.subr.bf16.mxu0 0
    %1525 = vmatpush1.bf16.msra.mxu0 0
    %1526 = vmatprep.subr.bf16.mxu0 0
    %1527 = vmatpush1.bf16.msra.mxu0 0
    %1528 = vmatprep.subr.bf16.mxu0 0
    %1529 = vmatpush1.bf16.msra.mxu0 0
    %1530 = vmatprep.subr.bf16.mxu0 0
    %1531 = vmatpush1.bf16.msra.mxu0 0
    %1532 = vmatprep.subr.bf16.mxu0 0
    %1533 = vmatpush1.bf16.msra.mxu0 0
    %1534 = vmatprep.subr.bf16.mxu0 0
    %1535 = vmatpush1.bf16.msra.mxu0 0
    %1536 = vmatprep.subr.bf16.mxu0 0
    %1537 = vmatpush1.bf16.msra.mxu0 0
    %1538 = vmatprep.subr.bf16.mxu0 0
    %1539 = vmatpush1.bf16.msra.mxu0 0
    %1540 = vmatprep.mubr.bf16.mxu0 0
    %1541 = vmatmul.mubr.bf16.gmra.mrb[0].mxu0 %v1506
    %v1542 = vpop.f32.mrb[0].mxu0
    %v1543 = vadd.f32 %v1492, %v1542
    %v1544 = vpop.f32.mrb[0].mxu0
    %v1545 = vpop.f32.mrb[0].mxu0
    %v1546 = vpop.f32.mrb[0].mxu0
    %1547 = vdwg.mxu0
    %v1548 = vld [vmem:[%s924 + $0x2] sm:$0x1]
    %v1549 = vlaneseq
    %v1550 = vshrl.u32 %v1549, 7
    %v1551 = vsub.s32 0, %v1550
    %v1552 = vrot.slane %v1548, %v1551
    %v1553 = vadd.f32 %v1543, %v1552
    %v1554 = vadd.f32 %v1553, %v917
    %v1555 = vld [vmem:[%s924 + $0x4] sm:$0x1]
    %v1556 = vld [vmem:[%s924 + $0x5] sm:$0x1]
    %v1557 = vsel %vm39, %v1554, 0.0
    %1558 = vadd.xlane.f32.xlu0 %v1557
    %v1559 = vpop.xlane.xlu0 %1558
    %v1560 = vmul.f32 %v1559, %v43
    %v1561 = vmul.f32 %v1554, %v1554
    %v1562 = vsel %vm39, %v1561, 0.0
    %1563 = vadd.xlane.f32.xlu0 %v1562
    %v1564 = vpop.xlane.xlu0 %1563
    %v1565 = vmul.f32 %v1564, %v43
    %v1566 = vmul.f32 %v1560, %v1560
    %v1567 = vsub.f32 %v1565, %v1566
    %v1568 = vmax.f32 %v1567, 0.0
    %v1569 = vsub.f32 %v1554, %v1560
    %v1570 = vadd.f32 %v1568, 1e-12
    %v1571 = vrsqrt.pop %v1570
    %v1572 = vmul.f32 %v1569, %v1571
    %v1573 = vlaneseq
    %v1574 = vshrl.u32 %v1573, 7
    %v1575 = vsub.s32 0, %v1574
    %v1576 = vrot.slane %v1555, %v1575
    %v1577 = vmul.f32 %v1572, %v1576
    %v1578 = vlaneseq
    %v1579 = vshrl.u32 %v1578, 7
    %v1580 = vsub.s32 0, %v1579
    %v1581 = vrot.slane %v1556, %v1580
    %v1582 = vadd.f32 %v1577, %v1581
    %v1583 = vpack.c.bf16 %v1582, %v1582
    %v1584 = vld [vmem:[%s919 + $0x4] sm:$0xf]
    %v1585 = vld [vmem:[%s919 + $0xc] sm:$0xf]
    %v1586 = vld [vmem:[%s919 + $0x14] sm:$0xf]
    %v1587 = vld [vmem:[%s919 + $0x1c] sm:$0xf]
    %v1588 = vld [vmem:[%s924 + $0x1] sm:$0x1]
    %v1589 = vlaneseq
    %v1590 = vshrl.u32 %v1589, 7
    %v1591 = vsub.s32 0, %v1590
    %v1592 = vrot.slane %v1588, %v1591
    %v1597 = vunpack.c.l.b16 %v1584
    %v1598 = vunpack.c.l.b16 %v1585
    %v1599 = vunpack.c.l.b16 %v1586
    %v1600 = vunpack.c.l.b16 %v1587
    %v1601 = vpack.c.b16 %v1598, %v1597
    %v1602 = vpack.c.b16 %v1600, %v1599
    %v1606 = vsel %vm39, %v1583, 0
    %1608 = vmatprep.subr.bf16.mxu0 0
    %1609 = vmatpush1.bf16.msra.mxu0 %v1601
    %1610 = vmatprep.subr.bf16.mxu0 0
    %1611 = vmatpush1.bf16.msra.mxu0 %v1602
    %1612 = vmatprep.subr.bf16.mxu0 0
    %1613 = vmatpush1.bf16.msra.mxu0 0
    %1614 = vmatprep.subr.bf16.mxu0 0
    %1615 = vmatpush1.bf16.msra.mxu0 0
    %1616 = vmatprep.subr.bf16.mxu0 0
    %1617 = vmatpush1.bf16.msra.mxu0 0
    %1618 = vmatprep.subr.bf16.mxu0 0
    %1619 = vmatpush1.bf16.msra.mxu0 0
    %1620 = vmatprep.subr.bf16.mxu0 0
    %1621 = vmatpush1.bf16.msra.mxu0 0
    %1622 = vmatprep.subr.bf16.mxu0 0
    %1623 = vmatpush1.bf16.msra.mxu0 0
    %1624 = vmatprep.subr.bf16.mxu0 0
    %1625 = vmatpush1.bf16.msra.mxu0 0
    %1626 = vmatprep.subr.bf16.mxu0 0
    %1627 = vmatpush1.bf16.msra.mxu0 0
    %1628 = vmatprep.subr.bf16.mxu0 0
    %1629 = vmatpush1.bf16.msra.mxu0 0
    %1630 = vmatprep.subr.bf16.mxu0 0
    %1631 = vmatpush1.bf16.msra.mxu0 0
    %1632 = vmatprep.subr.bf16.mxu0 0
    %1633 = vmatpush1.bf16.msra.mxu0 0
    %1634 = vmatprep.subr.bf16.mxu0 0
    %1635 = vmatpush1.bf16.msra.mxu0 0
    %1636 = vmatprep.subr.bf16.mxu0 0
    %1637 = vmatpush1.bf16.msra.mxu0 0
    %1638 = vmatprep.subr.bf16.mxu0 0
    %1639 = vmatpush1.bf16.msra.mxu0 0
    %1640 = vmatprep.mubr.bf16.mxu0 0
    %1641 = vmatmul.mubr.bf16.gmra.mrb[0].mxu0 %v1606
    %v1642 = vpop.f32.mrb[0].mxu0
    %v1643 = vadd.f32 %v1592, %v1642
    %v1644 = vpop.f32.mrb[0].mxu0
    %v1645 = vpop.f32.mrb[0].mxu0
    %v1646 = vpop.f32.mrb[0].mxu0
    %1647 = vdwg.mxu0
    %v1648 = vmul.f32 %v1643, 0.5
    %v1649 = vmul.f32 %v1643, 0.044715
    %v1650 = vmul.f32 %v1649, %v1643
    %v1651 = vmul.f32 %v1650, %v1643
    %v1652 = vadd.f32 %v1643, %v1651
    %v1653 = vmul.f32 %v1652, 0.7978846
    %v1654 = vtanh.pop %v1653
    %v1655 = vadd.f32 %v1654, 1.0
    %v1656 = vmul.f32 %v1648, %v1655
    %v1657 = vpack.c.bf16 %v1656, %v1656
    %s1658 = scalar_lea.vmem %s3, 32
    %v1659 = vld [vmem:[%s1658] sm:$0xf]
    %v1660 = vld [vmem:[%s1658 + $0x4] sm:$0xf]
    %v1661 = vld [vmem:[%s1658 + $0x8] sm:$0xf]
    %v1662 = vld [vmem:[%s1658 + $0xc] sm:$0xf]
    %v1663 = vld [vmem:[%s1658 + $0x10] sm:$0xf]
    %v1664 = vld [vmem:[%s1658 + $0x14] sm:$0xf]
    %v1665 = vld [vmem:[%s1658 + $0x18] sm:$0xf]
    %v1666 = vld [vmem:[%s1658 + $0x1c] sm:$0xf]
    %v1667 = vld [vmem:[%s924 + $0x3] sm:$0x1]
    %v1668 = vlaneseq
    %v1669 = vshrl.u32 %v1668, 7
    %v1670 = vsub.s32 0, %v1669
    %v1671 = vrot.slane %v1667, %v1670
    %v1680 = vunpack.c.l.b16 %v1659
    %v1681 = vunpack.c.l.b16 %v1660
    %v1682 = vunpack.c.l.b16 %v1661
    %v1683 = vunpack.c.l.b16 %v1662
    %v1684 = vunpack.c.l.b16 %v1663
    %v1685 = vunpack.c.l.b16 %v1664
    %v1686 = vunpack.c.l.b16 %v1665
    %v1687 = vunpack.c.l.b16 %v1666
    %v1688 = vpack.c.b16 %v1681, %v1680
    %v1689 = vpack.c.b16 %v1683, %v1682
    %v1690 = vpack.c.b16 %v1685, %v1684
    %v1691 = vpack.c.b16 %v1687, %v1686
    %v1697 = vsel %vm845, %v1657, 0
    %1699 = vmatprep.subr.bf16.mxu0 0
    %1700 = vmatpush1.bf16.msra.mxu0 %v1688
    %1701 = vmatprep.subr.bf16.mxu0 0
    %1702 = vmatpush1.bf16.msra.mxu0 %v1689
    %1703 = vmatprep.subr.bf16.mxu0 0
    %1704 = vmatpush1.bf16.msra.mxu0 %v1690
    %1705 = vmatprep.subr.bf16.mxu0 0
    %1706 = vmatpush1.bf16.msra.mxu0 %v1691
    %1707 = vmatprep.subr.bf16.mxu0 0
    %1708 = vmatpush1.bf16.msra.mxu0 0
    %1709 = vmatprep.subr.bf16.mxu0 0
    %1710 = vmatpush1.bf16.msra.mxu0 0
    %1711 = vmatprep.subr.bf16.mxu0 0
    %1712 = vmatpush1.bf16.msra.mxu0 0
    %1713 = vmatprep.subr.bf16.mxu0 0
    %1714 = vmatpush1.bf16.msra.mxu0 0
    %1715 = vmatprep.subr.bf16.mxu0 0
    %1716 = vmatpush1.bf16.msra.mxu0 0
    %1717 = vmatprep.subr.bf16.mxu0 0
    %1718 = vmatpush1.bf16.msra.mxu0 0
    %1719 = vmatprep.subr.bf16.mxu0 0
    %1720 = vmatpush1.bf16.msra.mxu0 0
    %1721 = vmatprep.subr.bf16.mxu0 0
    %1722 = vmatpush1.bf16.msra.mxu0 0
    %1723 = vmatprep.subr.bf16.mxu0 0
    %1724 = vmatpush1.bf16.msra.mxu0 0
    %1725 = vmatprep.subr.bf16.mxu0 0
    %1726 = vmatpush1.bf16.msra.mxu0 0
    %1727 = vmatprep.subr.bf16.mxu0 0
    %1728 = vmatpush1.bf16.msra.mxu0 0
    %1729 = vmatprep.subr.bf16.mxu0 0
    %1730 = vmatpush1.bf16.msra.mxu0 0
    %1731 = vmatprep.mubr.bf16.mxu0 0
    %1732 = vmatmul.mubr.bf16.gmra.mrb[0].mxu0 %v1697
    %v1733 = vpop.f32.mrb[0].mxu0
    %v1734 = vadd.f32 %v1671, %v1733
    %v1735 = vpop.f32.mrb[0].mxu0
    %v1736 = vpop.f32.mrb[0].mxu0
    %v1737 = vpop.f32.mrb[0].mxu0
    %1738 = vdwg.mxu0
    %v1739 = vadd.f32 %v1734, %v1582
    %v1740 = vld [vmem:[%s924 + $0x6] sm:$0x1]
    %v1741 = vld [vmem:[%s924 + $0x7] sm:$0x1]
    %v1742 = vsel %vm39, %v1739, 0.0
    %1743 = vadd.xlane.f32.xlu0 %v1742
    %v1744 = vpop.xlane.xlu0 %1743
    %v1745 = vmul.f32 %v1744, %v43
    %v1746 = vmul.f32 %v1739, %v1739
    %v1747 = vsel %vm39, %v1746, 0.0
    %1748 = vadd.xlane.f32.xlu0 %v1747
    %v1749 = vpop.xlane.xlu0 %1748
    %v1750 = vmul.f32 %v1749, %v43
    %v1751 = vmul.f32 %v1745, %v1745
    %v1752 = vsub.f32 %v1750, %v1751
    %v1753 = vmax.f32 %v1752, 0.0
    %v1754 = vsub.f32 %v1739, %v1745
    %v1755 = vadd.f32 %v1753, 1e-12
    %v1756 = vrsqrt.pop %v1755
    %v1757 = vmul.f32 %v1754, %v1756
    %v1758 = vlaneseq
    %v1759 = vshrl.u32 %v1758, 7
    %v1760 = vsub.s32 0, %v1759
    %v1761 = vrot.slane %v1740, %v1760
    %v1762 = vmul.f32 %v1757, %v1761
    %v1763 = vlaneseq
    %v1764 = vshrl.u32 %v1763, 7
    %v1765 = vsub.s32 0, %v1764
    %v1766 = vrot.slane %v1741, %v1765
    %v1767 = vadd.f32 %v1762, %v1766
    %1768 = vst.msk [vmem:[#allocation5] sm:$0xff] %vm39, %v1767
    // Predicated region
    $region26: #{tpu_custom_call.1} parent=1 // pred_check
      _
    $region27: #{tpu_custom_call.1} parent=1 // pred_check_branch
      %1770 = sbr.rel (0) target = $region29
    $region28: #{tpu_custom_call.1} parent=1 // pred_region
      %s1772 = ssub.s32 128, 128
      %1773 = vsyncadd [#allocation4], %s1772
      %s1775 = sshll.u32 [#allocation5], 4
      %s1776 = int_to_ptr.vmem [resolvable:$true] %s1775
      %1778 = dma.vmem_to_hbm [thread:$0]  %s1776, 128, %s5, [#allocation4]
    $region29: #{tpu_custom_call.1} parent=1 // pred_fallthru
      _
    // Predicated region
    $region30: #{tpu_custom_call.1} parent=1 // pred_check
      _
    $region31: #{tpu_custom_call.1} parent=1 // pred_check_branch
      %1780 = sbr.rel (0) target = $region33
    $region32: #{tpu_custom_call.1} parent=1 // pred_region
      %1781 = dma.done [#allocation4], 128
    $region33: #{tpu_custom_call.1} parent=1 // pred_fallthru
      _
    %1782 = vsyncpa [#allocation3], 1
    %1783 = vsyncpa [#allocation4], 1

</llo_original>
